<compile_context>
chip_gen: v7x
topology: tpu7x:2x2x1
jax: 0.10.0
libtpu: 0.0.40
codegen_flags: <defaults>
</compile_context>

<pallas_src>
import math

import jax
import jax.numpy as jnp
from jax.experimental import pallas as pl
from jax.experimental.pallas import tpu as pltpu


# ----------------------------------------------------------------------------
# Kernel factory (static slice offsets for the packed operands baked in).
# ----------------------------------------------------------------------------
def _make_kernel(E):
    half = E // 2
    neg_log_mp_over_half = -math.log(10000.0) / half
    # bias-pack row offsets (all multiples of 8 when E % 16 == 0)
    ob_b1, ob_b2, ob_bp1, ob_bp2 = 0, E, 2 * E, 4 * E

    def kernel(ts_ref, xT_ref, yT_ref, wA_ref, wB_ref, b_ref, outT_ref):
        wdt = wA_ref.dtype  # weight dtype (f32 or bf16)

        def mm(w, act):
            # cast activations to the weight dtype only at the MXU boundary;
            # always accumulate in f32.
            return jnp.dot(w, act.astype(wdt), preferred_element_type=jnp.float32)

        def bias(off, rows):
            return b_ref[off:off + rows, :]      # [rows, 1] f32, lane-broadcast

        # ---- sinusoidal timestep embedding, in-kernel, transposed ------------
        ts = ts_ref[...]                                               # [1, Bb]
        j = jax.lax.broadcasted_iota(jnp.int32, (half, 1), 0).astype(jnp.float32)
        freqs = jnp.exp(j * neg_log_mp_over_half)                      # [half, 1]
        args = freqs * ts                                              # [half, Bb]
        teT = jnp.concatenate([jnp.cos(args), jnp.sin(args)], axis=0)  # [E, Bb]

        # ---- time_mlp: Linear -> ReLU -> Linear ------------------------------
        h = jnp.maximum(mm(wA_ref[0:E, :], teT) + bias(ob_b1, E), 0.0)
        tembT = mm(wA_ref[E:2 * E, :], h) + bias(ob_b2, E)

        # ---- temb += y --------------------------------------------------------
        tembT = tembT + yT_ref[...].astype(jnp.float32)

        # ---- predict_mlp on cat([x, temb]) (cheap sublane concat) -------------
        catT = jnp.concatenate([xT_ref[...].astype(jnp.float32), tembT], axis=0)
        h2 = jnp.maximum(mm(wB_ref[0:2 * E, :], catT) + bias(ob_bp1, 2 * E), 0.0)
        outT = mm(wB_ref[2 * E:3 * E, :], h2) + bias(ob_bp2, E)

        outT_ref[...] = outT.astype(outT_ref.dtype)

    return kernel


# ----------------------------------------------------------------------------
# Grid sizing: batch maps to lanes, so a block must be a multiple of 128
# (or the full batch, which is always layout-legal).
# ----------------------------------------------------------------------------
def _single_tensorcore_chip():
    """Best-effort check for single-TC chips (v5e / v6e)."""
    try:
        kind = jax.devices()[0].device_kind.lower()
    except Exception:
        return False
    return any(t in kind for t in ("v5 lite", "v5lite", "v5e", "v6 lite", "v6lite", "v6e"))


def _choose_block_b(B, block_b=None):
    """Pick the lane (batch) block width.

    Fewer, larger blocks amortize the ~0.35us per-grid-step overhead; on
    dual-TC chips (v7x) we keep >= 2 parallel blocks so the "parallel" batch
    axis shards across both cores.  Pass block_b explicitly to sweep.
    """
    if block_b is not None:
        return block_b
    if B % 128 != 0:
        return B                                   # full-array block, always legal
    if _single_tensorcore_chip():
        return B                                   # grid=(1,): zero step overhead
    target = max(128, min(2048, B // 2))           # >= 2 parallel blocks for v7x
    cand = (target // 128) * 128
    while cand > 128 and B % cand != 0:
        cand -= 128
    return cand if B % cand == 0 else B


# ----------------------------------------------------------------------------
# Wrapper: batch-in-lanes layout, packed weights resident in VMEM across steps.
# ----------------------------------------------------------------------------
def diffusion_net_forward(x, timesteps, y, packA, packB, biases, *, block_b=None):
    B, E = x.shape
    assert E % 16 == 0, (
        "packing assumes embedding_dim is a multiple of 16 (even cos/sin halves, "
        "sublane-aligned slices); odd dims (zero-padded in the torch reference) "
        "are not supported here"
    )
    assert packA.shape == (2 * E, E)
    assert packB.shape == (3 * E, 2 * E)
    assert biases.shape == (5 * E, 1) and biases.dtype == jnp.float32

    bb = _choose_block_b(B, block_b)
    grid = (B // bb,)

    # Layout plumbing (cheap XLA transposes): batch -> lanes.
    tsT = timesteps.astype(jnp.float32).reshape(1, B)
    xT = x.T
    yT = y.T

    kernel = _make_kernel(E)

    wbytes = packA.size * packA.dtype.itemsize + packB.size * packB.dtype.itemsize
    cost = pl.CostEstimate(
        flops=16 * B * E * E,                      # 2B*(E^2 + E^2 + 4E^2 + 2E^2)
        transcendentals=B * E + E // 2,            # cos/sin per element + freq exp
        bytes_accessed=4 * (B + 3 * B * E + 5 * E) + wbytes,
    )

    outT = pl.pallas_call(
        kernel,
        out_shape=jax.ShapeDtypeStruct((E, B), jnp.float32),
        grid=grid,
        in_specs=[
            pl.BlockSpec((1, bb), lambda i: (0, i)),        # timesteps row
            pl.BlockSpec((E, bb), lambda i: (0, i)),        # x^T block
            pl.BlockSpec((E, bb), lambda i: (0, i)),        # y^T block
            # Weight/bias packs: constant index_map -> resident across steps
            # (Pallas skips the re-DMA for an unchanged block; an explicit
            # pl.Buffered(1) would only trim an unused ~40 KB second buffer).
            pl.BlockSpec((2 * E, E), lambda i: (0, 0)),     # [W1; W2]
            pl.BlockSpec((3 * E, 2 * E), lambda i: (0, 0)),  # [Wp1; Wp2]
            pl.BlockSpec((5 * E, 1), lambda i: (0, 0)),     # f32 biases
        ],
        out_specs=pl.BlockSpec((E, bb), lambda i: (0, i)),
        compiler_params=pltpu.CompilerParams(
            dimension_semantics=("parallel",),              # batch blocks independent
        ),
        cost_estimate=cost,
    )(tsT, xT, yT, packA, packB, biases)

    return outT.T


# ----------------------------------------------------------------------------
# Parameters: PyTorch-native [out, in] weights, biases as [out, 1] columns.
# ----------------------------------------------------------------------------
def init_params(key, E):
    ks = jax.random.split(key, 8)

    def lin(kw, kb, fan_in, fan_out):
        bound = 1.0 / math.sqrt(fan_in)
        w = jax.random.uniform(kw, (fan_out, fan_in), jnp.float32, -bound, bound)
        b = jax.random.uniform(kb, (fan_out, 1), jnp.float32, -bound, bound)
        return w, b

    w1, b1 = lin(ks[0], ks[1], E, E)              # time_mlp.0
    w2, b2 = lin(ks[2], ks[3], E, E)              # time_mlp.2
    wp1, bp1 = lin(ks[4], ks[5], 2 * E, 2 * E)    # predict_mlp.0
    wp2, bp2 = lin(ks[6], ks[7], 2 * E, E)        # predict_mlp.2 (learn_sigma=False)
    return dict(w1=w1, b1=b1, w2=w2, b2=b2, wp1=wp1, bp1=bp1, wp2=wp2, bp2=bp2)


def pack_params(p, weight_dtype=jnp.bfloat16):
    """Two contiguous weight packs (grouped by contraction width) + f32 biases.

    packA [2E, E]  = [W1; W2]          packB [3E, 2E] = [Wp1; Wp2]
    biases [5E, 1] = [b1; b2; bp1; bp2]  (always f32)
    """
    E = p["w1"].shape[0]
    packA = jnp.concatenate([p["w1"], p["w2"]], axis=0).astype(weight_dtype)
    packB = jnp.concatenate([p["wp1"], p["wp2"]], axis=0).astype(weight_dtype)
    biases = jnp.concatenate(
        [p["b1"], p["b2"], p["bp1"], p["bp2"]], axis=0
    ).astype(jnp.float32)
    return packA, packB, biases


# ----------------------------------------------------------------------------
# Pure-JAX reference (mirrors the PyTorch forward, highest-precision matmuls).
# ----------------------------------------------------------------------------
def reference_forward(x, timesteps, y, p):
    B, E = x.shape
    half = E // 2
    hp = jax.lax.Precision.HIGHEST
    freqs = jnp.exp(-math.log(10000.0) * jnp.arange(half, dtype=jnp.float32) / half)
    args = timesteps.astype(jnp.float32)[:, None] * freqs[None, :]
    te = jnp.concatenate([jnp.cos(args), jnp.sin(args)], axis=-1)

    h = jnp.maximum(jnp.dot(te, p["w1"].T, precision=hp) + p["b1"][:, 0], 0.0)
    temb = jnp.dot(h, p["w2"].T, precision=hp) + p["b2"][:, 0] + y
    cat = jnp.concatenate([x, temb], axis=-1)
    h2 = jnp.maximum(jnp.dot(cat, p["wp1"].T, precision=hp) + p["bp1"][:, 0], 0.0)
    return jnp.dot(h2, p["wp2"].T, precision=hp) + p["bp2"][:, 0]


if __name__ == "__main__":
    # model_opt: latent_size=8, encoder_layers=4 -> embedding_dim E = 32,
    # learn_sigma=False.  x: [B, E], timesteps: [B], y: [B, E].
    # TODO(synk): training-time classifier-free y-dropout (np.random < 0.1) is a
    # host-side RNG branch; only the eval path (y given) is implemented.
    latent_size, encoder_layers = 8, 4
    E = latent_size * encoder_layers          # 32
    B = 256                                   # lane-aligned batch

    key = jax.random.PRNGKey(0)
    kp, kx, ky, kt = jax.random.split(key, 4)

    params = init_params(kp, E)
    x = jax.random.normal(kx, (B, E), jnp.float32)
    y = jax.random.normal(ky, (B, E), jnp.float32)
    timesteps = jax.random.randint(kt, (B,), 0, 1000).astype(jnp.int32)

    ref = reference_forward(x, timesteps, y, params)

    # --- f32 weights: correctness check ---------------------------------------
    packA, packB, biases = pack_params(params, jnp.float32)
    out = jax.block_until_ready(
        diffusion_net_forward(x, timesteps, y, packA, packB, biases)
    )
    assert out.shape == (B, E)
    # tolerance covers possible default (single-pass bf16) MXU precision modes
    assert float(jnp.max(jnp.abs(out - ref))) < 3e-2

    # --- bf16 weights (MXU-native on v6e/v7x), biases stay f32 ----------------
    packA16, packB16, biases16 = pack_params(params, jnp.bfloat16)
    out16 = jax.block_until_ready(
        diffusion_net_forward(x, timesteps, y, packA16, packB16, biases16)
    )
    assert out16.shape == (B, E)
    assert bool(jnp.all(jnp.isfinite(out16)))
    assert float(jnp.max(jnp.abs(out16 - ref))) < 0.15

    print("KERNEL_OK")
</pallas_src>

<mosaic_0001>
module attributes {stable_mosaic.version = 11 : i64} {
  func.func @kernel(%arg0: i32, %arg1: memref<1x128xf32, #tpu.memory_space<vmem>>, %arg2: memref<32x128xf32, #tpu.memory_space<vmem>>, %arg3: memref<32x128xf32, #tpu.memory_space<vmem>>, %arg4: memref<64x32xf32, #tpu.memory_space<vmem>>, %arg5: memref<96x64xf32, #tpu.memory_space<vmem>>, %arg6: memref<160x1xf32, #tpu.memory_space<vmem>>, %arg7: memref<32x128xf32, #tpu.memory_space<vmem>>) attributes {dimension_semantics = [#tpu.dimension_semantics<parallel>], iteration_bounds = array<i64: 2>, scalar_prefetch = 0 : i64, scratch_operands = 0 : i64, tpu.core_type = #tpu.core_type<tc>, window_params = [{transform_indices = @transform_0, window_bounds = array<i64: 1, 128>}, {transform_indices = @transform_1, window_bounds = array<i64: 32, 128>}, {transform_indices = @transform_2, window_bounds = array<i64: 32, 128>}, {pipeline_mode = #tpu.pipeline_mode<synchronous>, transform_indices = @transform_3, window_bounds = array<i64: 64, 32>}, {pipeline_mode = #tpu.pipeline_mode<synchronous>, transform_indices = @transform_4, window_bounds = array<i64: 96, 64>}, {pipeline_mode = #tpu.pipeline_mode<synchronous>, transform_indices = @transform_5, window_bounds = array<i64: 160, 1>}, {transform_indices = @transform_6, window_bounds = array<i64: 32, 128>}]} {
    %c0 = arith.constant 0 : index
    %c0_0 = arith.constant 0 : index
    %0 = vector.load %arg1[%c0, %c0_0] : memref<1x128xf32, #tpu.memory_space<vmem>>, vector<1x128xf32>
    %1 = tpu.iota {dimensions = array<i32: 0>} : vector<16x1xi32>
    %2 = arith.sitofp %1 : vector<16x1xi32> to vector<16x1xf32>
    %cst = arith.constant -0.575646281 : f32
    %3 = vector.broadcast %cst : f32 to vector<16x1xf32>
    %4 = arith.mulf %2, %3 : vector<16x1xf32>
    %5 = math.exp %4 : vector<16x1xf32>
    %6 = vector.broadcast %5 : vector<16x1xf32> to vector<16x128xf32>
    %7 = vector.broadcast %0 : vector<1x128xf32> to vector<16x128xf32>
    %8 = arith.mulf %6, %7 : vector<16x128xf32>
    %9 = math.cos %8 : vector<16x128xf32>
    %10 = math.sin %8 : vector<16x128xf32>
    %11 = tpu.concatenate %9, %10 in 0 : vector<16x128xf32>, vector<16x128xf32> -> vector<32x128xf32>
    %c0_1 = arith.constant 0 : index
    %c0_2 = arith.constant 0 : index
    %12 = vector.load %arg4[%c0_1, %c0_2] : memref<64x32xf32, #tpu.memory_space<vmem>>, vector<32x32xf32>
    %cst_3 = arith.constant dense<0.000000e+00> : vector<32x128xf32>
    %13 = tpu.matmul %12, %11, %cst_3 {dimension_numbers = #tpu.dot_dimension_numbers<[1], [0], [0], [1], [0, 0, 1, 1], [], []>} : vector<32x32xf32>, vector<32x128xf32>, vector<32x128xf32> -> vector<32x128xf32>
    %c0_4 = arith.constant 0 : index
    %c0_5 = arith.constant 0 : index
    %14 = vector.load %arg6[%c0_4, %c0_5] : memref<160x1xf32, #tpu.memory_space<vmem>>, vector<32x1xf32>
    %15 = vector.broadcast %14 : vector<32x1xf32> to vector<32x128xf32>
    %16 = arith.addf %13, %15 : vector<32x128xf32>
    %cst_6 = arith.constant 0.000000e+00 : f32
    %17 = vector.broadcast %cst_6 : f32 to vector<32x128xf32>
    %18 = arith.maximumf %16, %17 : vector<32x128xf32>
    %c32 = arith.constant 32 : index
    %c0_7 = arith.constant 0 : index
    %19 = vector.load %arg4[%c32, %c0_7] : memref<64x32xf32, #tpu.memory_space<vmem>>, vector<32x32xf32>
    %cst_8 = arith.constant dense<0.000000e+00> : vector<32x128xf32>
    %20 = tpu.matmul %19, %18, %cst_8 {dimension_numbers = #tpu.dot_dimension_numbers<[1], [0], [0], [1], [0, 0, 1, 1], [], []>} : vector<32x32xf32>, vector<32x128xf32>, vector<32x128xf32> -> vector<32x128xf32>
    %c32_9 = arith.constant 32 : index
    %c0_10 = arith.constant 0 : index
    %21 = vector.load %arg6[%c32_9, %c0_10] : memref<160x1xf32, #tpu.memory_space<vmem>>, vector<32x1xf32>
    %22 = vector.broadcast %21 : vector<32x1xf32> to vector<32x128xf32>
    %23 = arith.addf %20, %22 : vector<32x128xf32>
    %c0_11 = arith.constant 0 : index
    %c0_12 = arith.constant 0 : index
    %24 = vector.load %arg3[%c0_11, %c0_12] : memref<32x128xf32, #tpu.memory_space<vmem>>, vector<32x128xf32>
    %25 = arith.addf %23, %24 : vector<32x128xf32>
    %c0_13 = arith.constant 0 : index
    %c0_14 = arith.constant 0 : index
    %26 = vector.load %arg2[%c0_13, %c0_14] : memref<32x128xf32, #tpu.memory_space<vmem>>, vector<32x128xf32>
    %27 = tpu.concatenate %26, %25 in 0 : vector<32x128xf32>, vector<32x128xf32> -> vector<64x128xf32>
    %c0_15 = arith.constant 0 : index
    %c0_16 = arith.constant 0 : index
    %28 = vector.load %arg5[%c0_15, %c0_16] : memref<96x64xf32, #tpu.memory_space<vmem>>, vector<64x64xf32>
    %cst_17 = arith.constant dense<0.000000e+00> : vector<64x128xf32>
    %29 = tpu.matmul %28, %27, %cst_17 {dimension_numbers = #tpu.dot_dimension_numbers<[1], [0], [0], [1], [0, 0, 1, 1], [], []>} : vector<64x64xf32>, vector<64x128xf32>, vector<64x128xf32> -> vector<64x128xf32>
    %c64 = arith.constant 64 : index
    %c0_18 = arith.constant 0 : index
    %30 = vector.load %arg6[%c64, %c0_18] : memref<160x1xf32, #tpu.memory_space<vmem>>, vector<64x1xf32>
    %31 = vector.broadcast %30 : vector<64x1xf32> to vector<64x128xf32>
    %32 = arith.addf %29, %31 : vector<64x128xf32>
    %cst_19 = arith.constant 0.000000e+00 : f32
    %33 = vector.broadcast %cst_19 : f32 to vector<64x128xf32>
    %34 = arith.maximumf %32, %33 : vector<64x128xf32>
    %c64_20 = arith.constant 64 : index
    %c0_21 = arith.constant 0 : index
    %35 = vector.load %arg5[%c64_20, %c0_21] : memref<96x64xf32, #tpu.memory_space<vmem>>, vector<32x64xf32>
    %cst_22 = arith.constant dense<0.000000e+00> : vector<32x128xf32>
    %36 = tpu.matmul %35, %34, %cst_22 {dimension_numbers = #tpu.dot_dimension_numbers<[1], [0], [0], [1], [0, 0, 1, 1], [], []>} : vector<32x64xf32>, vector<64x128xf32>, vector<32x128xf32> -> vector<32x128xf32>
    %c128 = arith.constant 128 : index
    %c0_23 = arith.constant 0 : index
    %37 = vector.load %arg6[%c128, %c0_23] : memref<160x1xf32, #tpu.memory_space<vmem>>, vector<32x1xf32>
    %38 = vector.broadcast %37 : vector<32x1xf32> to vector<32x128xf32>
    %39 = arith.addf %36, %38 : vector<32x128xf32>
    %c0_24 = arith.constant 0 : index
    %c0_25 = arith.constant 0 : index
    %40 = vector.load %arg7[%c0_24, %c0_25] : memref<32x128xf32, #tpu.memory_space<vmem>>, vector<32x128xf32>
    tpu.vector_store %arg7[%c0_24, %c0_25], %39 {strides = array<i32>} : memref<32x128xf32, #tpu.memory_space<vmem>>, vector<32x128xf32>,
    return
  }
  func.func @transform_0(%arg0: i32) -> (i32, i32) {
    %c0_i32 = arith.constant 0 : i32
    %c0_i32_0 = arith.constant 0 : i32
    return %c0_i32, %arg0 : i32, i32
  }
  func.func @transform_1(%arg0: i32) -> (i32, i32) {
    %c0_i32 = arith.constant 0 : i32
    %c0_i32_0 = arith.constant 0 : i32
    return %c0_i32, %arg0 : i32, i32
  }
  func.func @transform_2(%arg0: i32) -> (i32, i32) {
    %c0_i32 = arith.constant 0 : i32
    %c0_i32_0 = arith.constant 0 : i32
    return %c0_i32, %arg0 : i32, i32
  }
  func.func @transform_3(%arg0: i32) -> (i32, i32) {
    %c0_i32 = arith.constant 0 : i32
    %c0_i32_0 = arith.constant 0 : i32
    %c0_i32_1 = arith.constant 0 : i32
    return %c0_i32, %c0_i32_0 : i32, i32
  }
  func.func @transform_4(%arg0: i32) -> (i32, i32) {
    %c0_i32 = arith.constant 0 : i32
    %c0_i32_0 = arith.constant 0 : i32
    %c0_i32_1 = arith.constant 0 : i32
    return %c0_i32, %c0_i32_0 : i32, i32
  }
  func.func @transform_5(%arg0: i32) -> (i32, i32) {
    %c0_i32 = arith.constant 0 : i32
    %c0_i32_0 = arith.constant 0 : i32
    %c0_i32_1 = arith.constant 0 : i32
    return %c0_i32, %c0_i32_0 : i32, i32
  }
  func.func @transform_6(%arg0: i32) -> (i32, i32) {
    %c0_i32 = arith.constant 0 : i32
    %c0_i32_0 = arith.constant 0 : i32
    return %c0_i32, %arg0 : i32, i32
  }
}

</mosaic_0001>

<llo_original>
// kernel: tpu_custom_call.1
$region0: #{tpu_custom_call.1}
  #allocation0 [shape = 'u32[]', space=smem, size = 0x4, offset = 0x4, fixed_abs, tag = 'smem constant byte address 0x4 - core index']
  #allocation1 [shape = 'u32[144,128]{1,0:T(1,128)}', space=vmem, size = 0x12000, scoped, tag = 'internal scratch']
  %s0 = inlined_call_operand.vmem [shape: f32[1,256], index: 0, kind: input, shape index: {}]
  %s1 = inlined_call_operand.vmem [shape: f32[32,256], index: 1, kind: input, shape index: {}]
  %s2 = inlined_call_operand.vmem [shape: f32[32,256], index: 2, kind: input, shape index: {}]
  %s3 = inlined_call_operand.vmem [shape: f32[64,32], index: 3, kind: input, shape index: {}]
  %s4 = inlined_call_operand.vmem [shape: f32[96,64], index: 4, kind: input, shape index: {}]
  %s5 = inlined_call_operand.vmem [shape: f32[160,1], index: 5, kind: input, shape index: {}]
  %s6 = inlined_call_operand.hbm [shape: f32[32,256], index: 6, kind: output, shape index: {}]
  %s7 = sld [smem:[#allocation0]]
  $region133: #{tpu_custom_call.1} parent=0
    _
  %s9 = ssub.s32 1, %s7
  %s10 = scalar_select 0, %s9, %s7
  $region1: #{tpu_custom_call.1} parent=0
    #allocation2 [shape = 'u8[32768]{0}', space=vmem, size = 0x8000, scoped, tag = 'input window, operand 1']
    #allocation3 [shape = 'u8[32768]{0}', space=vmem, size = 0x8000, scoped, tag = 'input window, operand 2']
    #allocation4 [shape = 'u8[32768]{0}', space=vmem, size = 0x8000, scoped, tag = 'output window, operand 0']
    #allocation5 [shape = 's32[2]{0}', space=sflag, size = 0x8, scoped, tag = 'scoped memory for tpu_custom_call.1']
    %11 = vsyncpa [#allocation5], 0
    %s12 = scalar_lea.sflag [#allocation5], 1
    %13 = vsyncpa %s12, 0
    loop: start=0, step=1, limit=4
    $region2: #{tpu_custom_call.1} parent=1 // loop_pre_header
      _
    $region3: #{tpu_custom_call.1} parent=1 // loop_header
      %s15 = sphi 0, %s19
      %p16 = scmp.ge.s32.totalorder %s15, 4
      %s25 = sphi 0, %s27
      %s28 = sphi 0, %s25
      %s29 = sphi 0, %s28
      %s45 = sphi 0, %s29
      %s51 = sphi 0, %s53
      %s54 = sphi 0, %s51
      %s55 = sphi 0, %s54
      %s71 = sphi 0, %s55
      %s77 = sphi 0, %s79
      %s80 = sphi 0, %s77
      %s81 = sphi 0, %s80
      %s97 = sphi 0, %s81
      %s101 = sphi 0, %s101
      %s103 = sphi 0, %s101
      %s104 = sphi 0, %s103
      %s118 = sphi 0, %s104
      %s122 = sphi 0, %s122
      %s124 = sphi 0, %s122
      %s125 = sphi 0, %s124
      %s139 = sphi 0, %s125
      %s143 = sphi 0, %s143
      %s145 = sphi 0, %s143
      %s146 = sphi 0, %s145
      %s160 = sphi 0, %s146
      %s166 = sphi 0, %s168
      %s169 = sphi 0, %s166
      %s170 = sphi 0, %s169
      %s186 = sphi 0, %s170
    $region4: #{tpu_custom_call.1} parent=1 // loop_header_branch
      %18 = sbr.rel (%p16) target = $region8
    $region5: #{tpu_custom_call.1} parent=1 // loop_body
      %s20 = ssub.s32 %s15, 1
      %s21 = ssub.s32 %s15, 2
      %s22 = sadd.s32 %s15, 1
      %s23 = ssub.s32 %s15, %s22
      %p24 = scmp.eq.s32.totalorder %s23, 0
      %s26 = sadd.s32 %s25, 1
      %s27 = scalar_select %p24, %s25, %s26
      %p30 = pneg %p24
      %p31 = scmp.eq.s32.totalorder %s15, 1
      %p32 = por %p30, %p31
      %p33 = scmp.ne.s32.totalorder %s25, %s28
      %p34 = scmp.eq.s32.totalorder %s15, 0
      %p35 = por %p33, %p34
      %p36 = scmp.ne.s32.totalorder %s25, %s28
      %p37 = scmp.eq.s32.totalorder %s20, 1
      %p38 = por %p36, %p37
      %p39 = scmp.ne.s32.totalorder %s28, %s29
      %p40 = scmp.eq.s32.totalorder %s20, 0
      %p41 = por %p39, %p40
      %p42 = scmp.ne.s32.totalorder %s28, %s29
      %p43 = scmp.eq.s32.totalorder %s21, 1
      %p44 = por %p42, %p43
      %p46 = scmp.ne.s32.totalorder %s29, %s45
      %p47 = scmp.eq.s32.totalorder %s21, 0
      %p48 = por %p46, %p47
      %s49 = ssub.s32 %s15, %s22
      %p50 = scmp.eq.s32.totalorder %s49, 0
      %s52 = sadd.s32 %s51, 1
      %s53 = scalar_select %p50, %s51, %s52
      %p56 = pneg %p50
      %p57 = scmp.eq.s32.totalorder %s15, 1
      %p58 = por %p56, %p57
      %p59 = scmp.ne.s32.totalorder %s51, %s54
      %p60 = scmp.eq.s32.totalorder %s15, 0
      %p61 = por %p59, %p60
      %p62 = scmp.ne.s32.totalorder %s51, %s54
      %p63 = scmp.eq.s32.totalorder %s20, 1
      %p64 = por %p62, %p63
      %p65 = scmp.ne.s32.totalorder %s54, %s55
      %p66 = scmp.eq.s32.totalorder %s20, 0
      %p67 = por %p65, %p66
      %p68 = scmp.ne.s32.totalorder %s54, %s55
      %p69 = scmp.eq.s32.totalorder %s21, 1
      %p70 = por %p68, %p69
      %p72 = scmp.ne.s32.totalorder %s55, %s71
      %p73 = scmp.eq.s32.totalorder %s21, 0
      %p74 = por %p72, %p73
      %s75 = ssub.s32 %s15, %s22
      %p76 = scmp.eq.s32.totalorder %s75, 0
      %s78 = sadd.s32 %s77, 1
      %s79 = scalar_select %p76, %s77, %s78
      %p82 = pneg %p76
      %p83 = scmp.eq.s32.totalorder %s15, 1
      %p84 = por %p82, %p83
      %p85 = scmp.ne.s32.totalorder %s77, %s80
      %p86 = scmp.eq.s32.totalorder %s15, 0
      %p87 = por %p85, %p86
      %p88 = scmp.ne.s32.totalorder %s77, %s80
      %p89 = scmp.eq.s32.totalorder %s20, 1
      %p90 = por %p88, %p89
      %p91 = scmp.ne.s32.totalorder %s80, %s81
      %p92 = scmp.eq.s32.totalorder %s20, 0
      %p93 = por %p91, %p92
      %p94 = scmp.ne.s32.totalorder %s80, %s81
      %p95 = scmp.eq.s32.totalorder %s21, 1
      %p96 = por %p94, %p95
      %p98 = scmp.ne.s32.totalorder %s81, %s97
      %p99 = scmp.eq.s32.totalorder %s21, 0
      %p100 = por %p98, %p99
      %s102 = sadd.s32 %s101, 1
      %p105 = scmp.eq.s32.totalorder %s15, 1
      %p106 = scmp.ne.s32.totalorder %s101, %s103
      %p107 = scmp.eq.s32.totalorder %s15, 0
      %p108 = por %p106, %p107
      %p109 = scmp.ne.s32.totalorder %s101, %s103
      %p110 = scmp.eq.s32.totalorder %s20, 1
      %p111 = por %p109, %p110
      %p112 = scmp.ne.s32.totalorder %s103, %s104
      %p113 = scmp.eq.s32.totalorder %s20, 0
      %p114 = por %p112, %p113
      %p115 = scmp.ne.s32.totalorder %s103, %s104
      %p116 = scmp.eq.s32.totalorder %s21, 1
      %p117 = por %p115, %p116
      %p119 = scmp.ne.s32.totalorder %s104, %s118
      %p120 = scmp.eq.s32.totalorder %s21, 0
      %p121 = por %p119, %p120
      %s123 = sadd.s32 %s122, 1
      %p126 = scmp.eq.s32.totalorder %s15, 1
      %p127 = scmp.ne.s32.totalorder %s122, %s124
      %p128 = scmp.eq.s32.totalorder %s15, 0
      %p129 = por %p127, %p128
      %p130 = scmp.ne.s32.totalorder %s122, %s124
      %p131 = scmp.eq.s32.totalorder %s20, 1
      %p132 = por %p130, %p131
      %p133 = scmp.ne.s32.totalorder %s124, %s125
      %p134 = scmp.eq.s32.totalorder %s20, 0
      %p135 = por %p133, %p134
      %p136 = scmp.ne.s32.totalorder %s124, %s125
      %p137 = scmp.eq.s32.totalorder %s21, 1
      %p138 = por %p136, %p137
      %p140 = scmp.ne.s32.totalorder %s125, %s139
      %p141 = scmp.eq.s32.totalorder %s21, 0
      %p142 = por %p140, %p141
      %s144 = sadd.s32 %s143, 1
      %p147 = scmp.eq.s32.totalorder %s15, 1
      %p148 = scmp.ne.s32.totalorder %s143, %s145
      %p149 = scmp.eq.s32.totalorder %s15, 0
      %p150 = por %p148, %p149
      %p151 = scmp.ne.s32.totalorder %s143, %s145
      %p152 = scmp.eq.s32.totalorder %s20, 1
      %p153 = por %p151, %p152
      %p154 = scmp.ne.s32.totalorder %s145, %s146
      %p155 = scmp.eq.s32.totalorder %s20, 0
      %p156 = por %p154, %p155
      %p157 = scmp.ne.s32.totalorder %s145, %s146
      %p158 = scmp.eq.s32.totalorder %s21, 1
      %p159 = por %p157, %p158
      %p161 = scmp.ne.s32.totalorder %s146, %s160
      %p162 = scmp.eq.s32.totalorder %s21, 0
      %p163 = por %p161, %p162
      %s164 = ssub.s32 %s15, %s22
      %p165 = scmp.eq.s32.totalorder %s164, 0
      %s167 = sadd.s32 %s166, 1
      %s168 = scalar_select %p165, %s166, %s167
      %p171 = pneg %p165
      %p172 = scmp.eq.s32.totalorder %s15, 1
      %p173 = por %p171, %p172
      %p174 = scmp.ne.s32.totalorder %s166, %s169
      %p175 = scmp.eq.s32.totalorder %s15, 0
      %p176 = por %p174, %p175
      %p177 = scmp.ne.s32.totalorder %s166, %s169
      %p178 = scmp.eq.s32.totalorder %s20, 1
      %p179 = por %p177, %p178
      %p180 = scmp.ne.s32.totalorder %s169, %s170
      %p181 = scmp.eq.s32.totalorder %s20, 0
      %p182 = por %p180, %p181
      %p183 = scmp.ne.s32.totalorder %s169, %s170
      %p184 = scmp.eq.s32.totalorder %s21, 1
      %p185 = por %p183, %p184
      %p187 = scmp.ne.s32.totalorder %s170, %s186
      %p188 = scmp.eq.s32.totalorder %s21, 0
      %p189 = por %p187, %p188
      %p190 = scmp.le.s32.totalorder 1, %s15
      %p191 = scmp.lt.s32.totalorder %s15, 3
      %p192 = pnand %p190, %p191
      %p193 = pneg %p192
      // Predicated region
      $region9: #{tpu_custom_call.1} parent=5 // pred_check
        _
      $region10: #{tpu_custom_call.1} parent=5 // pred_check_branch
        %195 = sbr.rel (%p192) target = $region12
      $region11: #{tpu_custom_call.1} parent=5 // pred_region
        %s196 = ssub.s32 %s15, 1
        // Predicated region
        $region13: #{tpu_custom_call.1} parent=11 // pred_check
          %p197 = pneg %p114
        $region14: #{tpu_custom_call.1} parent=11 // pred_check_branch
          %199 = sbr.rel (%p197) target = $region16
        $region15: #{tpu_custom_call.1} parent=11 // pred_region
          _
        $region16: #{tpu_custom_call.1} parent=11 // pred_fallthru
          _
        // Predicated region
        $region17: #{tpu_custom_call.1} parent=11 // pred_check
          %p200 = pneg %p135
        $region18: #{tpu_custom_call.1} parent=11 // pred_check_branch
          %202 = sbr.rel (%p200) target = $region20
        $region19: #{tpu_custom_call.1} parent=11 // pred_region
          _
        $region20: #{tpu_custom_call.1} parent=11 // pred_fallthru
          _
        // Predicated region
        $region21: #{tpu_custom_call.1} parent=11 // pred_check
          %p203 = pneg %p156
        $region22: #{tpu_custom_call.1} parent=11 // pred_check_branch
          %205 = sbr.rel (%p203) target = $region24
        $region23: #{tpu_custom_call.1} parent=11 // pred_region
          _
        $region24: #{tpu_custom_call.1} parent=11 // pred_fallthru
          _
      $region12: #{tpu_custom_call.1} parent=5 // pred_fallthru
        _
      %p206 = scmp.lt.s32.totalorder %s15, 2
      // Predicated region
      $region25: #{tpu_custom_call.1} parent=5 // pred_check
        %p207 = pneg %p206
      $region26: #{tpu_custom_call.1} parent=5 // pred_check_branch
        %209 = sbr.rel (%p207) target = $region28
      $region27: #{tpu_custom_call.1} parent=5 // pred_region
        // Predicated region
        $region29: #{tpu_custom_call.1} parent=27 // pred_check
          %p210 = pneg %p35
        $region30: #{tpu_custom_call.1} parent=27 // pred_check_branch
          %212 = sbr.rel (%p210) target = $region32
        $region31: #{tpu_custom_call.1} parent=27 // pred_region
          %p213 = scmp.lt.s32.totalorder %s15, 1
          %s214 = scalar_select %p213, %s15, 1
          %s215 = scalar_lea.vmem %s0, %s214
        $region32: #{tpu_custom_call.1} parent=27 // pred_fallthru
          _
        // Predicated region
        $region33: #{tpu_custom_call.1} parent=27 // pred_check
          %p216 = pneg %p61
        $region34: #{tpu_custom_call.1} parent=27 // pred_check_branch
          %218 = sbr.rel (%p216) target = $region36
        $region35: #{tpu_custom_call.1} parent=27 // pred_region
          %s219 = sand.u32 %s51, 1
          %s220 = sand.u32 %s51, 1
          %s221 = smul.addr %s220, 32
          %s222 = scalar_lea.vmem [#allocation2], %s221
          %s223 = smul.addr %s15, 8
          %s224 = scalar_lea.vmem %s1, %s223
          // Predicated region
          $region37: #{tpu_custom_call.1} parent=35 // pred_check
            _
          $region38: #{tpu_custom_call.1} parent=35 // pred_check_branch
            %226 = sbr.rel (0) target = $region40
          $region39: #{tpu_custom_call.1} parent=35 // pred_region
            // Predicated region
            $region41: #{tpu_custom_call.1} parent=39 // pred_check
              _
            $region42: #{tpu_custom_call.1} parent=39 // pred_check_branch
              %228 = sbr.rel (0) target = $region44
            $region43: #{tpu_custom_call.1} parent=39 // pred_region
              // Predicated region
              $region56: #{tpu_custom_call.1} parent=43 // pred_check
                _
              $region57: #{tpu_custom_call.1} parent=43 // pred_check_branch
                %249 = sbr.rel (0) target = $region59
              $region58: #{tpu_custom_call.1} parent=43 // pred_region
                loop: start=0, step=1, limit=1
                $region60: #{tpu_custom_call.1} parent=58 // loop_pre_header
                  _
                $region61: #{tpu_custom_call.1} parent=58 // loop_header
                  %s251 = sphi 0, %s255
                  %p252 = scmp.ge.s32.totalorder %s251, 1
                  %s256 = sphi %s224, %s224
                  %s257 = sphi %s222, %s222
                $region62: #{tpu_custom_call.1} parent=58 // loop_header_branch
                  %254 = sbr.rel (%p252) target = $region66
                $region63: #{tpu_custom_call.1} parent=58 // loop_body
                  %v258 = vld [vmem:[%s256] sm:$0xff]
                  %259 = vst [vmem:[%s257] sm:$0xff] %v258
                  %v260 = vld [vmem:[%s256 + $0x10] sm:$0xff]
                  %261 = vst [vmem:[%s257 + $0x8] sm:$0xff] %v260
                  %v262 = vld [vmem:[%s256 + $0x20] sm:$0xff]
                  %263 = vst [vmem:[%s257 + $0x10] sm:$0xff] %v262
                  %v264 = vld [vmem:[%s256 + $0x30] sm:$0xff]
                  %265 = vst [vmem:[%s257 + $0x18] sm:$0xff] %v264
                $region64: #{tpu_custom_call.1} parent=58 // loop_footer
                  %s255 = sadd.s32 1, %s251
                $region65: #{tpu_custom_call.1} parent=58 // loop_footer_branch
                  %250 = sbr.rel target = $region61
                $region66: #{tpu_custom_call.1} parent=58 // loop_exit
                  _
              $region59: #{tpu_custom_call.1} parent=43 // pred_fallthru
                _
              // Predicated region
              $region67: #{tpu_custom_call.1} parent=43 // pred_check
                _
              $region68: #{tpu_custom_call.1} parent=43 // pred_check_branch
                %267 = sbr.rel target = $region70
              $region69: #{tpu_custom_call.1} parent=43 // pred_region
                _
              $region70: #{tpu_custom_call.1} parent=43 // pred_fallthru
                _
            $region44: #{tpu_custom_call.1} parent=39 // pred_fallthru
              _
            // Predicated region
            $region45: #{tpu_custom_call.1} parent=39 // pred_check
              _
            $region46: #{tpu_custom_call.1} parent=39 // pred_check_branch
              %230 = sbr.rel target = $region48
            $region47: #{tpu_custom_call.1} parent=39 // pred_region
              loop: start=0, step=1, limit=1
              $region49: #{tpu_custom_call.1} parent=47 // loop_pre_header
                _
              $region50: #{tpu_custom_call.1} parent=47 // loop_header
                %s233 = sphi 0, %s237
                %p234 = scmp.ge.s32.totalorder %s233, 1
                %s238 = sphi %s224, %s224
                %s239 = sphi %s222, %s222
              $region51: #{tpu_custom_call.1} parent=47 // loop_header_branch
                %236 = sbr.rel (%p234) target = $region55
              $region52: #{tpu_custom_call.1} parent=47 // loop_body
                %v240 = vld [vmem:[%s238] sm:$0xff]
                %241 = vst [vmem:[%s239] sm:$0xff] %v240
                %v242 = vld [vmem:[%s238 + $0x10] sm:$0xff]
                %243 = vst [vmem:[%s239 + $0x8] sm:$0xff] %v242
                %v244 = vld [vmem:[%s238 + $0x20] sm:$0xff]
                %245 = vst [vmem:[%s239 + $0x10] sm:$0xff] %v244
                %v246 = vld [vmem:[%s238 + $0x30] sm:$0xff]
                %247 = vst [vmem:[%s239 + $0x18] sm:$0xff] %v246
              $region53: #{tpu_custom_call.1} parent=47 // loop_footer
                %s237 = sadd.s32 1, %s233
              $region54: #{tpu_custom_call.1} parent=47 // loop_footer_branch
                %232 = sbr.rel target = $region50
              $region55: #{tpu_custom_call.1} parent=47 // loop_exit
                _
            $region48: #{tpu_custom_call.1} parent=39 // pred_fallthru
              _
          $region40: #{tpu_custom_call.1} parent=35 // pred_fallthru
            _
          %268 = vnop
        $region36: #{tpu_custom_call.1} parent=27 // pred_fallthru
          _
        // Predicated region
        $region71: #{tpu_custom_call.1} parent=27 // pred_check
          %p269 = pneg %p87
        $region72: #{tpu_custom_call.1} parent=27 // pred_check_branch
          %271 = sbr.rel (%p269) target = $region74
        $region73: #{tpu_custom_call.1} parent=27 // pred_region
          %s272 = sand.u32 %s77, 1
          %s273 = sand.u32 %s77, 1
          %s274 = smul.addr %s273, 32
          %s275 = scalar_lea.vmem [#allocation3], %s274
          %s276 = smul.addr %s15, 8
          %s277 = scalar_lea.vmem %s2, %s276
          // Predicated region
          $region75: #{tpu_custom_call.1} parent=73 // pred_check
            _
          $region76: #{tpu_custom_call.1} parent=73 // pred_check_branch
            %279 = sbr.rel (0) target = $region78
          $region77: #{tpu_custom_call.1} parent=73 // pred_region
            // Predicated region
            $region79: #{tpu_custom_call.1} parent=77 // pred_check
              _
            $region80: #{tpu_custom_call.1} parent=77 // pred_check_branch
              %281 = sbr.rel (0) target = $region82
            $region81: #{tpu_custom_call.1} parent=77 // pred_region
              // Predicated region
              $region94: #{tpu_custom_call.1} parent=81 // pred_check
                _
              $region95: #{tpu_custom_call.1} parent=81 // pred_check_branch
                %302 = sbr.rel (0) target = $region97
              $region96: #{tpu_custom_call.1} parent=81 // pred_region
                loop: start=0, step=1, limit=1
                $region98: #{tpu_custom_call.1} parent=96 // loop_pre_header
                  _
                $region99: #{tpu_custom_call.1} parent=96 // loop_header
                  %s304 = sphi 0, %s308
                  %p305 = scmp.ge.s32.totalorder %s304, 1
                  %s309 = sphi %s277, %s277
                  %s310 = sphi %s275, %s275
                $region100: #{tpu_custom_call.1} parent=96 // loop_header_branch
                  %307 = sbr.rel (%p305) target = $region104
                $region101: #{tpu_custom_call.1} parent=96 // loop_body
                  %v311 = vld [vmem:[%s309] sm:$0xff]
                  %312 = vst [vmem:[%s310] sm:$0xff] %v311
                  %v313 = vld [vmem:[%s309 + $0x10] sm:$0xff]
                  %314 = vst [vmem:[%s310 + $0x8] sm:$0xff] %v313
                  %v315 = vld [vmem:[%s309 + $0x20] sm:$0xff]
                  %316 = vst [vmem:[%s310 + $0x10] sm:$0xff] %v315
                  %v317 = vld [vmem:[%s309 + $0x30] sm:$0xff]
                  %318 = vst [vmem:[%s310 + $0x18] sm:$0xff] %v317
                $region102: #{tpu_custom_call.1} parent=96 // loop_footer
                  %s308 = sadd.s32 1, %s304
                $region103: #{tpu_custom_call.1} parent=96 // loop_footer_branch
                  %303 = sbr.rel target = $region99
                $region104: #{tpu_custom_call.1} parent=96 // loop_exit
                  _
              $region97: #{tpu_custom_call.1} parent=81 // pred_fallthru
                _
              // Predicated region
              $region105: #{tpu_custom_call.1} parent=81 // pred_check
                _
              $region106: #{tpu_custom_call.1} parent=81 // pred_check_branch
                %320 = sbr.rel target = $region108
              $region107: #{tpu_custom_call.1} parent=81 // pred_region
                _
              $region108: #{tpu_custom_call.1} parent=81 // pred_fallthru
                _
            $region82: #{tpu_custom_call.1} parent=77 // pred_fallthru
              _
            // Predicated region
            $region83: #{tpu_custom_call.1} parent=77 // pred_check
              _
            $region84: #{tpu_custom_call.1} parent=77 // pred_check_branch
              %283 = sbr.rel target = $region86
            $region85: #{tpu_custom_call.1} parent=77 // pred_region
              loop: start=0, step=1, limit=1
              $region87: #{tpu_custom_call.1} parent=85 // loop_pre_header
                _
              $region88: #{tpu_custom_call.1} parent=85 // loop_header
                %s286 = sphi 0, %s290
                %p287 = scmp.ge.s32.totalorder %s286, 1
                %s291 = sphi %s277, %s277
                %s292 = sphi %s275, %s275
              $region89: #{tpu_custom_call.1} parent=85 // loop_header_branch
                %289 = sbr.rel (%p287) target = $region93
              $region90: #{tpu_custom_call.1} parent=85 // loop_body
                %v293 = vld [vmem:[%s291] sm:$0xff]
                %294 = vst [vmem:[%s292] sm:$0xff] %v293
                %v295 = vld [vmem:[%s291 + $0x10] sm:$0xff]
                %296 = vst [vmem:[%s292 + $0x8] sm:$0xff] %v295
                %v297 = vld [vmem:[%s291 + $0x20] sm:$0xff]
                %298 = vst [vmem:[%s292 + $0x10] sm:$0xff] %v297
                %v299 = vld [vmem:[%s291 + $0x30] sm:$0xff]
                %300 = vst [vmem:[%s292 + $0x18] sm:$0xff] %v299
              $region91: #{tpu_custom_call.1} parent=85 // loop_footer
                %s290 = sadd.s32 1, %s286
              $region92: #{tpu_custom_call.1} parent=85 // loop_footer_branch
                %285 = sbr.rel target = $region88
              $region93: #{tpu_custom_call.1} parent=85 // loop_exit
                _
            $region86: #{tpu_custom_call.1} parent=77 // pred_fallthru
              _
          $region78: #{tpu_custom_call.1} parent=73 // pred_fallthru
            _
          %321 = vnop
        $region74: #{tpu_custom_call.1} parent=27 // pred_fallthru
          _
      $region28: #{tpu_custom_call.1} parent=5 // pred_fallthru
        _
      %p322 = scmp.le.s32.totalorder 1, %s15
      %p323 = scmp.lt.s32.totalorder %s15, 3
      %p324 = pnand %p322, %p323
      %p325 = pneg %p324
      // Predicated region
      $region109: #{tpu_custom_call.1} parent=5 // pred_check
        _
      $region110: #{tpu_custom_call.1} parent=5 // pred_check_branch
        %327 = sbr.rel (%p324) target = $region112
      $region111: #{tpu_custom_call.1} parent=5 // pred_region
        %s328 = ssub.s32 %s15, 1
        %s329 = sand.u32 %s54, 1
        %s330 = sand.u32 %s54, 1
        %s331 = smul.addr %s330, 32
        %s332 = scalar_lea.vmem [#allocation2], %s331
        // Predicated region
        $region113: #{tpu_custom_call.1} parent=111 // pred_check
          %p333 = pneg %p67
        $region114: #{tpu_custom_call.1} parent=111 // pred_check_branch
          %335 = sbr.rel (%p333) target = $region116
        $region115: #{tpu_custom_call.1} parent=111 // pred_region
          _
        $region116: #{tpu_custom_call.1} parent=111 // pred_fallthru
          _
        %s336 = sand.u32 %s80, 1
        %s337 = sand.u32 %s80, 1
        %s338 = smul.addr %s337, 32
        %s339 = scalar_lea.vmem [#allocation3], %s338
        // Predicated region
        $region117: #{tpu_custom_call.1} parent=111 // pred_check
          %p340 = pneg %p93
        $region118: #{tpu_custom_call.1} parent=111 // pred_check_branch
          %342 = sbr.rel (%p340) target = $region120
        $region119: #{tpu_custom_call.1} parent=111 // pred_region
          _
        $region120: #{tpu_custom_call.1} parent=111 // pred_fallthru
          _
        %p343 = scmp.lt.s32.totalorder %s20, 1
        %s344 = scalar_select %p343, %s20, 1
        %s345 = scalar_lea.vmem %s0, %s344
        %p346 = pneg %p41
        %p347 = pneg %p38
        %s348 = sand.u32 %s54, 1
        %s349 = sand.u32 %s54, 1
        %s350 = smul.addr %s349, 32
        %s351 = scalar_lea.vmem [#allocation2], %s350
        %p352 = pneg %p67
        %p353 = pneg %p64
        %s354 = sand.u32 %s80, 1
        %s355 = sand.u32 %s80, 1
        %s356 = smul.addr %s355, 32
        %s357 = scalar_lea.vmem [#allocation3], %s356
        %p358 = pneg %p93
        %p359 = pneg %p90
        %p360 = pneg %p114
        %p361 = pneg %p111
        %p362 = pneg %p135
        %p363 = pneg %p132
        %p364 = pneg %p156
        %p365 = pneg %p153
        %p366 = pneg %p182
        %p367 = pneg %p179
        %s368 = sand.u32 %s169, 1
        %s369 = scalar_lea.sflag [#allocation5], %s368
        %s370 = sand.u32 %s169, 1
        %s371 = smul.addr %s370, 32
        %s372 = scalar_lea.vmem [#allocation4], %s371
        %p373 = scmp.lt.s32.totalorder %s20, 1
        %s374 = scalar_select %p373, %s20, 1
        %s375 = scalar_lea.vmem %s0, %s374
        %v376 = vld [vmem:[%s375] sm:$0x1]
        %v377 = vlaneseq
        %v378 = vshrl.u32 %v377, 7
        %v379 = vadd.s32 %v378, 8
        %v380 = vcvt.s32.f32 %v378
        %v381 = vcvt.s32.f32 %v379
        %v382 = vmul.f32 %v380, -0.5756463
        %v383 = vmul.f32 %v381, -0.5756463
        %v384 = vmul.f32 %v382, 1.442695
        %v385 = vpow.pop %v384
        %v386 = vmul.f32 %v383, 1.442695
        %v387 = vpow.pop %v386
        %v389 = vlaneseq
        %v390 = vshrl.u32 %v389, 7
        %v391 = vsub.s32 0, %v390
        %v392 = vrot.slane %v376, %v391
        %v394 = vmul.f32 %v385, %v392
        %v395 = vmul.f32 %v387, %v392
        %v396 = vand.u32 2147483647, %v394
        %vm397 = vcmp.le.f32.partialorder %v396, 0.7853982
        %vm398 = vcmp.lt.s32.totalorder %v394, 0
        %v399 = vand.u32 %v394, 2139095040
        %v400 = vshrl.u32 %v399, 23
        %v401 = vsub.s32 %v400, 127
        %v402 = vand.u32 2147483647, %v394
        %v403 = vand.u32 %v402, 8388607
        %v404 = vor.u32 %v403, 8388608
        %v405 = vsub.s32 0, %v404
        %v406 = vadd.s32 %v401, 1
        %vm407 = vcmp.gt.s32.totalorder %v406, 0
        %v408 = vsel %vm407, %v406, 0
        %v409 = vshrl.u32 %v408, 5
        %v410 = vand.u32 %v408, 31
        %v411 = vsub.s32 32, %v410
        %v412 = vshrl.u32 683565275, %v411
        %v413 = vshll.u32 683565275, %v410
        %v414 = vshrl.u32 2475754826, %v411
        %v415 = vor.u32 %v413, %v414
        %v416 = vshll.u32 2475754826, %v410
        %v417 = vshrl.u32 2131351028, %v411
        %v418 = vor.u32 %v416, %v417
        %v419 = vshll.u32 2131351028, %v410
        %v420 = vshrl.u32 2102212464, %v411
        %v421 = vor.u32 %v419, %v420
        %v422 = vshll.u32 2102212464, %v410
        %v423 = vshrl.u32 920167782, %v411
        %v424 = vor.u32 %v422, %v423
        %v425 = vshll.u32 920167782, %v410
        %v426 = vshrl.u32 1326507024, %v411
        %v427 = vor.u32 %v425, %v426
        %vm428 = vcmp.lt.s32.totalorder %v409, 1
        %vm429 = vcmp.lt.s32.totalorder %v409, 2
        %vm430 = vcmp.lt.s32.totalorder %v409, 3
        %vm431 = vcmp.lt.s32.totalorder %v409, 4
        %v432 = vsel %vm428, %v412, %v415
        %v433 = vsel %vm431, %v421, 2102212464
        %v434 = vsel %vm430, %v418, %v433
        %v435 = vsel %vm429, %v432, %v434
        %v436 = vsel %vm428, %v415, %v418
        %v437 = vsel %vm431, %v424, 920167782
        %v438 = vsel %vm430, %v421, %v437
        %v439 = vsel %vm429, %v436, %v438
        %v440 = vsel %vm428, %v418, %v421
        %v441 = vsel %vm431, %v427, 1326507024
        %v442 = vsel %vm430, %v424, %v441
        %v443 = vsel %vm429, %v440, %v442
        %v444 = vshll.u32 %v404, 8
        %v445 = vmul.u32.u64.compose %v444, %v443
        %v446 = vextract.low.u32 %v445
        %v447 = vextract.high.u32 %v445
        %v448 = vmul.u32.u64.compose %v444, %v439
        %v449 = vextract.low.u32 %v448
        %v450 = vextract.high.u32 %v448
        %v451 = vmul.u32 %v444, %v435
        %v452 = vadd.s32 %v447, %v449
        %vm453 = vc.u32 %v447, %v449
        %v454 = vadd.s32 %v450, 1
        %v455 = vsel %vm453, %v454, %v450
        %v456 = vadd.s32 %v451, %v455
        %v457 = vadd.s32 %v456, 536870912
        %v458 = vshrl.u32 %v457, 30
        %v459 = vshll.u32 %v458, 30
        %v460 = vsub.s32 %v456, %v459
        %vm461 = vcmp.lt.s32.totalorder %v460, 0
        %v462 = vsub.s32 0, %v460
        %v463 = vsel %vm461, %v462, %v460
        %v464 = vclz %v463
        %v465 = vsub.s32 %v464, 2
        %vm466 = vcmp.gt.s32.totalorder 0, %v465
        %v467 = vsel %vm466, 0, %v465
        %v468 = vsub.s32 32, %v467
        %v469 = vshll.u32 %v460, %v467
        %v470 = vshrl.u32 %v452, %v468
        %v471 = vor.u32 %v469, %v470
        %v472 = vsub.s32 4294967266, %v467
        %v473 = vadd.s32 %v472, 127
        %v474 = vshll.u32 %v473, 23
        %v475 = vor.u32 4788187, %v474
        %v476 = vand.u32 2147483647, %v475
        %v478 = vcvt.s32.f32 %v471
        %v479 = vmul.f32 %v478, %v476
        %v480 = vxor.u32 %v479, 2147483648
        %v481 = vsel %vm398, %v480, %v479
        %v482 = vsub.s32 4, %v458
        %v483 = vsel %vm398, %v482, %v458
        %v484 = vsel %vm397, %v394, %v481
        %v485 = vsel %vm397, 0, %v483
        %v486 = vcosq.f32.pop %v484
        %v487 = vsinq.f32.pop %v484
        %vm488 = vweird.f32 %v394
        %v489 = vand.u32 %v485, 3
        %vm490 = vcmp.lt.s32.totalorder %v489, 2
        %vm491 = vcmp.eq.s32.totalorder %v489, 0
        %v492 = vxor.u32 %v487, 2147483648
        %v493 = vsel %vm491, %v486, %v492
        %vm494 = vcmp.eq.s32.totalorder %v489, 2
        %v495 = vxor.u32 %v486, 2147483648
        %v496 = vsel %vm494, %v495, %v487
        %v497 = vsel %vm490, %v493, %v496
        %v498 = vsel %vm488, nan, %v497
        %v499 = vand.u32 2147483647, %v395
        %vm500 = vcmp.le.f32.partialorder %v499, 0.7853982
        %vm501 = vcmp.lt.s32.totalorder %v395, 0
        %v502 = vand.u32 %v395, 2139095040
        %v503 = vshrl.u32 %v502, 23
        %v504 = vsub.s32 %v503, 127
        %v505 = vand.u32 2147483647, %v395
        %v506 = vand.u32 %v505, 8388607
        %v507 = vor.u32 %v506, 8388608
        %v508 = vsub.s32 0, %v507
        %v509 = vadd.s32 %v504, 1
        %vm510 = vcmp.gt.s32.totalorder %v509, 0
        %v511 = vsel %vm510, %v509, 0
        %v512 = vshrl.u32 %v511, 5
        %v513 = vand.u32 %v511, 31
        %v514 = vsub.s32 32, %v513
        %v515 = vshrl.u32 683565275, %v514
        %v516 = vshll.u32 683565275, %v513
        %v517 = vshrl.u32 2475754826, %v514
        %v518 = vor.u32 %v516, %v517
        %v519 = vshll.u32 2475754826, %v513
        %v520 = vshrl.u32 2131351028, %v514
        %v521 = vor.u32 %v519, %v520
        %v522 = vshll.u32 2131351028, %v513
        %v523 = vshrl.u32 2102212464, %v514
        %v524 = vor.u32 %v522, %v523
        %v525 = vshll.u32 2102212464, %v513
        %v526 = vshrl.u32 920167782, %v514
        %v527 = vor.u32 %v525, %v526
        %v528 = vshll.u32 920167782, %v513
        %v529 = vshrl.u32 1326507024, %v514
        %v530 = vor.u32 %v528, %v529
        %vm531 = vcmp.lt.s32.totalorder %v512, 1
        %vm532 = vcmp.lt.s32.totalorder %v512, 2
        %vm533 = vcmp.lt.s32.totalorder %v512, 3
        %vm534 = vcmp.lt.s32.totalorder %v512, 4
        %v535 = vsel %vm531, %v515, %v518
        %v536 = vsel %vm534, %v524, 2102212464
        %v537 = vsel %vm533, %v521, %v536
        %v538 = vsel %vm532, %v535, %v537
        %v539 = vsel %vm531, %v518, %v521
        %v540 = vsel %vm534, %v527, 920167782
        %v541 = vsel %vm533, %v524, %v540
        %v542 = vsel %vm532, %v539, %v541
        %v543 = vsel %vm531, %v521, %v524
        %v544 = vsel %vm534, %v530, 1326507024
        %v545 = vsel %vm533, %v527, %v544
        %v546 = vsel %vm532, %v543, %v545
        %v547 = vshll.u32 %v507, 8
        %v548 = vmul.u32.u64.compose %v547, %v546
        %v549 = vextract.low.u32 %v548
        %v550 = vextract.high.u32 %v548
        %v551 = vmul.u32.u64.compose %v547, %v542
        %v552 = vextract.low.u32 %v551
        %v553 = vextract.high.u32 %v551
        %v554 = vmul.u32 %v547, %v538
        %v555 = vadd.s32 %v550, %v552
        %vm556 = vc.u32 %v550, %v552
        %v557 = vadd.s32 %v553, 1
        %v558 = vsel %vm556, %v557, %v553
        %v559 = vadd.s32 %v554, %v558
        %v560 = vadd.s32 %v559, 536870912
        %v561 = vshrl.u32 %v560, 30
        %v562 = vshll.u32 %v561, 30
        %v563 = vsub.s32 %v559, %v562
        %vm564 = vcmp.lt.s32.totalorder %v563, 0
        %v565 = vsub.s32 0, %v563
        %v566 = vsel %vm564, %v565, %v563
        %v567 = vclz %v566
        %v568 = vsub.s32 %v567, 2
        %vm569 = vcmp.gt.s32.totalorder 0, %v568
        %v570 = vsel %vm569, 0, %v568
        %v571 = vsub.s32 32, %v570
        %v572 = vshll.u32 %v563, %v570
        %v573 = vshrl.u32 %v555, %v571
        %v574 = vor.u32 %v572, %v573
        %v575 = vsub.s32 4294967266, %v570
        %v576 = vadd.s32 %v575, 127
        %v577 = vshll.u32 %v576, 23
        %v578 = vor.u32 4788187, %v577
        %v579 = vand.u32 2147483647, %v578
        %v581 = vcvt.s32.f32 %v574
        %v582 = vmul.f32 %v581, %v579
        %v583 = vxor.u32 %v582, 2147483648
        %v584 = vsel %vm501, %v583, %v582
        %v585 = vsub.s32 4, %v561
        %v586 = vsel %vm501, %v585, %v561
        %v587 = vsel %vm500, %v395, %v584
        %v588 = vsel %vm500, 0, %v586
        %v589 = vcosq.f32.pop %v587
        %v590 = vsinq.f32.pop %v587
        %vm591 = vweird.f32 %v395
        %v592 = vand.u32 %v588, 3
        %vm593 = vcmp.lt.s32.totalorder %v592, 2
        %vm594 = vcmp.eq.s32.totalorder %v592, 0
        %v595 = vxor.u32 %v590, 2147483648
        %v596 = vsel %vm594, %v589, %v595
        %vm597 = vcmp.eq.s32.totalorder %v592, 2
        %v598 = vxor.u32 %v589, 2147483648
        %v599 = vsel %vm597, %v598, %v590
        %v600 = vsel %vm593, %v596, %v599
        %v601 = vsel %vm591, nan, %v600
        %v602 = vand.u32 2147483647, %v394
        %vm603 = vcmp.le.f32.partialorder %v602, 0.7853982
        %vm604 = vcmp.lt.s32.totalorder %v394, 0
        %v605 = vand.u32 %v394, 2139095040
        %v606 = vshrl.u32 %v605, 23
        %v607 = vsub.s32 %v606, 127
        %v608 = vand.u32 2147483647, %v394
        %v609 = vand.u32 %v608, 8388607
        %v610 = vor.u32 %v609, 8388608
        %v611 = vsub.s32 0, %v610
        %v612 = vadd.s32 %v607, 1
        %vm613 = vcmp.gt.s32.totalorder %v612, 0
        %v614 = vsel %vm613, %v612, 0
        %v615 = vshrl.u32 %v614, 5
        %v616 = vand.u32 %v614, 31
        %v617 = vsub.s32 32, %v616
        %v618 = vshrl.u32 683565275, %v617
        %v619 = vshll.u32 683565275, %v616
        %v620 = vshrl.u32 2475754826, %v617
        %v621 = vor.u32 %v619, %v620
        %v622 = vshll.u32 2475754826, %v616
        %v623 = vshrl.u32 2131351028, %v617
        %v624 = vor.u32 %v622, %v623
        %v625 = vshll.u32 2131351028, %v616
        %v626 = vshrl.u32 2102212464, %v617
        %v627 = vor.u32 %v625, %v626
        %v628 = vshll.u32 2102212464, %v616
        %v629 = vshrl.u32 920167782, %v617
        %v630 = vor.u32 %v628, %v629
        %v631 = vshll.u32 920167782, %v616
        %v632 = vshrl.u32 1326507024, %v617
        %v633 = vor.u32 %v631, %v632
        %vm634 = vcmp.lt.s32.totalorder %v615, 1
        %vm635 = vcmp.lt.s32.totalorder %v615, 2
        %vm636 = vcmp.lt.s32.totalorder %v615, 3
        %vm637 = vcmp.lt.s32.totalorder %v615, 4
        %v638 = vsel %vm634, %v618, %v621
        %v639 = vsel %vm637, %v627, 2102212464
        %v640 = vsel %vm636, %v624, %v639
        %v641 = vsel %vm635, %v638, %v640
        %v642 = vsel %vm634, %v621, %v624
        %v643 = vsel %vm637, %v630, 920167782
        %v644 = vsel %vm636, %v627, %v643
        %v645 = vsel %vm635, %v642, %v644
        %v646 = vsel %vm634, %v624, %v627
        %v647 = vsel %vm637, %v633, 1326507024
        %v648 = vsel %vm636, %v630, %v647
        %v649 = vsel %vm635, %v646, %v648
        %v650 = vshll.u32 %v610, 8
        %v651 = vmul.u32.u64.compose %v650, %v649
        %v652 = vextract.low.u32 %v651
        %v653 = vextract.high.u32 %v651
        %v654 = vmul.u32.u64.compose %v650, %v645
        %v655 = vextract.low.u32 %v654
        %v656 = vextract.high.u32 %v654
        %v657 = vmul.u32 %v650, %v641
        %v658 = vadd.s32 %v653, %v655
        %vm659 = vc.u32 %v653, %v655
        %v660 = vadd.s32 %v656, 1
        %v661 = vsel %vm659, %v660, %v656
        %v662 = vadd.s32 %v657, %v661
        %v663 = vadd.s32 %v662, 536870912
        %v664 = vshrl.u32 %v663, 30
        %v665 = vshll.u32 %v664, 30
        %v666 = vsub.s32 %v662, %v665
        %vm667 = vcmp.lt.s32.totalorder %v666, 0
        %v668 = vsub.s32 0, %v666
        %v669 = vsel %vm667, %v668, %v666
        %v670 = vclz %v669
        %v671 = vsub.s32 %v670, 2
        %vm672 = vcmp.gt.s32.totalorder 0, %v671
        %v673 = vsel %vm672, 0, %v671
        %v674 = vsub.s32 32, %v673
        %v675 = vshll.u32 %v666, %v673
        %v676 = vshrl.u32 %v658, %v674
        %v677 = vor.u32 %v675, %v676
        %v678 = vsub.s32 4294967266, %v673
        %v679 = vadd.s32 %v678, 127
        %v680 = vshll.u32 %v679, 23
        %v681 = vor.u32 4788187, %v680
        %v682 = vand.u32 2147483647, %v681
        %v684 = vcvt.s32.f32 %v677
        %v685 = vmul.f32 %v684, %v682
        %v686 = vxor.u32 %v685, 2147483648
        %v687 = vsel %vm604, %v686, %v685
        %v688 = vsub.s32 4, %v664
        %v689 = vsel %vm604, %v688, %v664
        %v690 = vsel %vm603, %v394, %v687
        %v691 = vsel %vm603, 0, %v689
        %v692 = vcosq.f32.pop %v690
        %v693 = vsinq.f32.pop %v690
        %vm694 = vweird.f32 %v394
        %v695 = vadd.s32 %v691, 3
        %v696 = vand.u32 %v695, 3
        %vm697 = vcmp.lt.s32.totalorder %v696, 2
        %vm698 = vcmp.eq.s32.totalorder %v696, 0
        %v699 = vxor.u32 %v693, 2147483648
        %v700 = vsel %vm698, %v692, %v699
        %vm701 = vcmp.eq.s32.totalorder %v696, 2
        %v702 = vxor.u32 %v692, 2147483648
        %v703 = vsel %vm701, %v702, %v693
        %v704 = vsel %vm697, %v700, %v703
        %v705 = vsel %vm694, nan, %v704
        %v706 = vand.u32 2147483647, %v395
        %vm707 = vcmp.le.f32.partialorder %v706, 0.7853982
        %vm708 = vcmp.lt.s32.totalorder %v395, 0
        %v709 = vand.u32 %v395, 2139095040
        %v710 = vshrl.u32 %v709, 23
        %v711 = vsub.s32 %v710, 127
        %v712 = vand.u32 2147483647, %v395
        %v713 = vand.u32 %v712, 8388607
        %v714 = vor.u32 %v713, 8388608
        %v715 = vsub.s32 0, %v714
        %v716 = vadd.s32 %v711, 1
        %vm717 = vcmp.gt.s32.totalorder %v716, 0
        %v718 = vsel %vm717, %v716, 0
        %v719 = vshrl.u32 %v718, 5
        %v720 = vand.u32 %v718, 31
        %v721 = vsub.s32 32, %v720
        %v722 = vshrl.u32 683565275, %v721
        %v723 = vshll.u32 683565275, %v720
        %v724 = vshrl.u32 2475754826, %v721
        %v725 = vor.u32 %v723, %v724
        %v726 = vshll.u32 2475754826, %v720
        %v727 = vshrl.u32 2131351028, %v721
        %v728 = vor.u32 %v726, %v727
        %v729 = vshll.u32 2131351028, %v720
        %v730 = vshrl.u32 2102212464, %v721
        %v731 = vor.u32 %v729, %v730
        %v732 = vshll.u32 2102212464, %v720
        %v733 = vshrl.u32 920167782, %v721
        %v734 = vor.u32 %v732, %v733
        %v735 = vshll.u32 920167782, %v720
        %v736 = vshrl.u32 1326507024, %v721
        %v737 = vor.u32 %v735, %v736
        %vm738 = vcmp.lt.s32.totalorder %v719, 1
        %vm739 = vcmp.lt.s32.totalorder %v719, 2
        %vm740 = vcmp.lt.s32.totalorder %v719, 3
        %vm741 = vcmp.lt.s32.totalorder %v719, 4
        %v742 = vsel %vm738, %v722, %v725
        %v743 = vsel %vm741, %v731, 2102212464
        %v744 = vsel %vm740, %v728, %v743
        %v745 = vsel %vm739, %v742, %v744
        %v746 = vsel %vm738, %v725, %v728
        %v747 = vsel %vm741, %v734, 920167782
        %v748 = vsel %vm740, %v731, %v747
        %v749 = vsel %vm739, %v746, %v748
        %v750 = vsel %vm738, %v728, %v731
        %v751 = vsel %vm741, %v737, 1326507024
        %v752 = vsel %vm740, %v734, %v751
        %v753 = vsel %vm739, %v750, %v752
        %v754 = vshll.u32 %v714, 8
        %v755 = vmul.u32.u64.compose %v754, %v753
        %v756 = vextract.low.u32 %v755
        %v757 = vextract.high.u32 %v755
        %v758 = vmul.u32.u64.compose %v754, %v749
        %v759 = vextract.low.u32 %v758
        %v760 = vextract.high.u32 %v758
        %v761 = vmul.u32 %v754, %v745
        %v762 = vadd.s32 %v757, %v759
        %vm763 = vc.u32 %v757, %v759
        %v764 = vadd.s32 %v760, 1
        %v765 = vsel %vm763, %v764, %v760
        %v766 = vadd.s32 %v761, %v765
        %v767 = vadd.s32 %v766, 536870912
        %v768 = vshrl.u32 %v767, 30
        %v769 = vshll.u32 %v768, 30
        %v770 = vsub.s32 %v766, %v769
        %vm771 = vcmp.lt.s32.totalorder %v770, 0
        %v772 = vsub.s32 0, %v770
        %v773 = vsel %vm771, %v772, %v770
        %v774 = vclz %v773
        %v775 = vsub.s32 %v774, 2
        %vm776 = vcmp.gt.s32.totalorder 0, %v775
        %v777 = vsel %vm776, 0, %v775
        %v778 = vsub.s32 32, %v777
        %v779 = vshll.u32 %v770, %v777
        %v780 = vshrl.u32 %v762, %v778
        %v781 = vor.u32 %v779, %v780
        %v782 = vsub.s32 4294967266, %v777
        %v783 = vadd.s32 %v782, 127
        %v784 = vshll.u32 %v783, 23
        %v785 = vor.u32 4788187, %v784
        %v786 = vand.u32 2147483647, %v785
        %v788 = vcvt.s32.f32 %v781
        %v789 = vmul.f32 %v788, %v786
        %v790 = vxor.u32 %v789, 2147483648
        %v791 = vsel %vm708, %v790, %v789
        %v792 = vsub.s32 4, %v768
        %v793 = vsel %vm708, %v792, %v768
        %v794 = vsel %vm707, %v395, %v791
        %v795 = vsel %vm707, 0, %v793
        %v796 = vcosq.f32.pop %v794
        %v797 = vsinq.f32.pop %v794
        %vm798 = vweird.f32 %v395
        %v799 = vadd.s32 %v795, 3
        %v800 = vand.u32 %v799, 3
        %vm801 = vcmp.lt.s32.totalorder %v800, 2
        %vm802 = vcmp.eq.s32.totalorder %v800, 0
        %v803 = vxor.u32 %v797, 2147483648
        %v804 = vsel %vm802, %v796, %v803
        %vm805 = vcmp.eq.s32.totalorder %v800, 2
        %v806 = vxor.u32 %v796, 2147483648
        %v807 = vsel %vm805, %v806, %v797
        %v808 = vsel %vm801, %v804, %v807
        %v809 = vsel %vm798, nan, %v808
        %v810 = vld [vmem:[%s3] sm:$0xff]
        %v811 = vld [vmem:[%s3 + $0x8] sm:$0xff]
        %v812 = vld [vmem:[%s3 + $0x10] sm:$0xff]
        %v813 = vld [vmem:[%s3 + $0x18] sm:$0xff]
        %v814 = vld [vmem:[%s5] sm:$0xff]
        %v815 = vld [vmem:[%s5 + $0x8] sm:$0xff]
        %v816 = vld [vmem:[%s5 + $0x10] sm:$0xff]
        %v817 = vld [vmem:[%s5 + $0x18] sm:$0xff]
        %819 = vset.pattern.permute.xlu0 0
        %820 = vperm.xlu0 %819, %v814
        %v821 = vpop.permute.xlu0 %820
        %824 = vset.pattern.permute.xlu0 0
        %825 = vperm.xlu0 %824, %v815
        %v826 = vpop.permute.xlu0 %825
        %829 = vset.pattern.permute.xlu0 0
        %830 = vperm.xlu0 %829, %v816
        %v831 = vpop.permute.xlu0 %830
        %834 = vset.pattern.permute.xlu0 0
        %835 = vperm.xlu0 %834, %v817
        %v836 = vpop.permute.xlu0 %835
        %vm838 = vcmask 261120
        %v840 = vsel %vm838, %v810, 0
        %v843 = vsel %vm838, %v811, 0
        %v846 = vsel %vm838, %v812, 0
        %v849 = vsel %vm838, %v813, 0
        %851 = vmatprep.subr.mxu0 0.0
        %852 = vmatpush1.msra.mxu0 %v498
        %853 = vmatprep.subr.mxu0 0.0
        %854 = vmatpush1.msra.mxu0 %v601
        %855 = vmatprep.subr.mxu0 0.0
        %856 = vmatpush1.msra.mxu0 %v705
        %857 = vmatprep.subr.mxu0 0.0
        %858 = vmatpush1.msra.mxu0 %v809
        %859 = vmatprep.subr.mxu0 0.0
        %860 = vmatpush1.msra.mxu0 0.0
        %861 = vmatprep.subr.mxu0 0.0
        %862 = vmatpush1.msra.mxu0 0.0
        %863 = vmatprep.subr.mxu0 0.0
        %864 = vmatpush1.msra.mxu0 0.0
        %865 = vmatprep.subr.mxu0 0.0
        %866 = vmatpush1.msra.mxu0 0.0
        %867 = vmatprep.subr.mxu0 0.0
        %868 = vmatpush1.msra.mxu0 0.0
        %869 = vmatprep.subr.mxu0 0.0
        %870 = vmatpush1.msra.mxu0 0.0
        %871 = vmatprep.subr.mxu0 0.0
        %872 = vmatpush1.msra.mxu0 0.0
        %873 = vmatprep.subr.mxu0 0.0
        %874 = vmatpush1.msra.mxu0 0.0
        %875 = vmatprep.subr.mxu0 0.0
        %876 = vmatpush1.msra.mxu0 0.0
        %877 = vmatprep.subr.mxu0 0.0
        %878 = vmatpush1.msra.mxu0 0.0
        %879 = vmatprep.subr.mxu0 0.0
        %880 = vmatpush1.msra.mxu0 0.0
        %881 = vmatprep.subr.mxu0 0.0
        %882 = vmatpush1.msra.mxu0 0.0
        %883 = vmatprep.subr.mxu0 0.0
        %884 = vmatpush1.msra.mxu0 0.0
        %885 = vmatprep.subr.mxu0 0.0
        %886 = vmatpush1.msra.mxu0 0.0
        %887 = vmatprep.subr.mxu0 0.0
        %888 = vmatpush1.msra.mxu0 0.0
        %889 = vmatprep.subr.mxu0 0.0
        %890 = vmatpush1.msra.mxu0 0.0
        %891 = vmatprep.subr.mxu0 0.0
        %892 = vmatpush1.msra.mxu0 0.0
        %893 = vmatprep.subr.mxu0 0.0
        %894 = vmatpush1.msra.mxu0 0.0
        %895 = vmatprep.subr.mxu0 0.0
        %896 = vmatpush1.msra.mxu0 0.0
        %897 = vmatprep.subr.mxu0 0.0
        %898 = vmatpush1.msra.mxu0 0.0
        %899 = vmatprep.subr.mxu0 0.0
        %900 = vmatpush1.msra.mxu0 0.0
        %901 = vmatprep.subr.mxu0 0.0
        %902 = vmatpush1.msra.mxu0 0.0
        %903 = vmatprep.subr.mxu0 0.0
        %904 = vmatpush1.msra.mxu0 0.0
        %905 = vmatprep.subr.mxu0 0.0
        %906 = vmatpush1.msra.mxu0 0.0
        %907 = vmatprep.subr.mxu0 0.0
        %908 = vmatpush1.msra.mxu0 0.0
        %909 = vmatprep.subr.mxu0 0.0
        %910 = vmatpush1.msra.mxu0 0.0
        %911 = vmatprep.subr.mxu0 0.0
        %912 = vmatpush1.msra.mxu0 0.0
        %913 = vmatprep.subr.mxu0 0.0
        %914 = vmatpush1.msra.mxu0 0.0
        %915 = vmatprep.mubr.f32.mxu0 0.0
        %916 = vmatmul.mubr.f32.gmra.mrb[0].mxu0 %v840
        %v917 = vpop.f32.mrb[0].mxu0
        %v918 = vadd.f32 %v821, %v917
        %v919 = vpop.f32.mrb[0].mxu0
        %920 = vmatprep.mubr.f32.mxu0 0.0
        %921 = vmatmul.mubr.f32.gmra.mrb[0].mxu0 %v843
        %v922 = vpop.f32.mrb[0].mxu0
        %v923 = vadd.f32 %v826, %v922
        %v924 = vpop.f32.mrb[0].mxu0
        %925 = vmatprep.mubr.f32.mxu0 0.0
        %926 = vmatmul.mubr.f32.gmra.mrb[0].mxu0 %v846
        %v927 = vpop.f32.mrb[0].mxu0
        %v928 = vadd.f32 %v831, %v927
        %v929 = vpop.f32.mrb[0].mxu0
        %930 = vmatprep.mubr.f32.mxu0 0.0
        %931 = vmatmul.mubr.f32.gmra.mrb[0].mxu0 %v849
        %v932 = vpop.f32.mrb[0].mxu0
        %v933 = vadd.f32 %v836, %v932
        %v934 = vpop.f32.mrb[0].mxu0
        %935 = vdwg.mxu0
        %v936 = vmax.f32 %v918, 0.0
        %v937 = vmax.f32 %v923, 0.0
        %v938 = vmax.f32 %v928, 0.0
        %v939 = vmax.f32 %v933, 0.0
        %v940 = vld [vmem:[%s3 + $0x20] sm:$0xff]
        %v941 = vld [vmem:[%s3 + $0x28] sm:$0xff]
        %v942 = vld [vmem:[%s3 + $0x30] sm:$0xff]
        %v943 = vld [vmem:[%s3 + $0x38] sm:$0xff]
        %v944 = vld [vmem:[%s5 + $0x20] sm:$0xff]
        %v945 = vld [vmem:[%s5 + $0x28] sm:$0xff]
        %v946 = vld [vmem:[%s5 + $0x30] sm:$0xff]
        %v947 = vld [vmem:[%s5 + $0x38] sm:$0xff]
        %949 = vset.pattern.permute.xlu0 0
        %950 = vperm.xlu0 %949, %v944
        %v951 = vpop.permute.xlu0 %950
        %954 = vset.pattern.permute.xlu0 0
        %955 = vperm.xlu0 %954, %v945
        %v956 = vpop.permute.xlu0 %955
        %959 = vset.pattern.permute.xlu0 0
        %960 = vperm.xlu0 %959, %v946
        %v961 = vpop.permute.xlu0 %960
        %964 = vset.pattern.permute.xlu0 0
        %965 = vperm.xlu0 %964, %v947
        %v966 = vpop.permute.xlu0 %965
        %v969 = vsel %vm838, %v940, 0
        %v972 = vsel %vm838, %v941, 0
        %v975 = vsel %vm838, %v942, 0
        %v978 = vsel %vm838, %v943, 0
        %980 = vmatprep.subr.mxu0 0.0
        %981 = vmatpush1.msra.mxu0 %v936
        %982 = vmatprep.subr.mxu0 0.0
        %983 = vmatpush1.msra.mxu0 %v937
        %984 = vmatprep.subr.mxu0 0.0
        %985 = vmatpush1.msra.mxu0 %v938
        %986 = vmatprep.subr.mxu0 0.0
        %987 = vmatpush1.msra.mxu0 %v939
        %988 = vmatprep.subr.mxu0 0.0
        %989 = vmatpush1.msra.mxu0 0.0
        %990 = vmatprep.subr.mxu0 0.0
        %991 = vmatpush1.msra.mxu0 0.0
        %992 = vmatprep.subr.mxu0 0.0
        %993 = vmatpush1.msra.mxu0 0.0
        %994 = vmatprep.subr.mxu0 0.0
        %995 = vmatpush1.msra.mxu0 0.0
        %996 = vmatprep.subr.mxu0 0.0
        %997 = vmatpush1.msra.mxu0 0.0
        %998 = vmatprep.subr.mxu0 0.0
        %999 = vmatpush1.msra.mxu0 0.0
        %1000 = vmatprep.subr.mxu0 0.0
        %1001 = vmatpush1.msra.mxu0 0.0
        %1002 = vmatprep.subr.mxu0 0.0
        %1003 = vmatpush1.msra.mxu0 0.0
        %1004 = vmatprep.subr.mxu0 0.0
        %1005 = vmatpush1.msra.mxu0 0.0
        %1006 = vmatprep.subr.mxu0 0.0
        %1007 = vmatpush1.msra.mxu0 0.0
        %1008 = vmatprep.subr.mxu0 0.0
        %1009 = vmatpush1.msra.mxu0 0.0
        %1010 = vmatprep.subr.mxu0 0.0
        %1011 = vmatpush1.msra.mxu0 0.0
        %1012 = vmatprep.subr.mxu0 0.0
        %1013 = vmatpush1.msra.mxu0 0.0
        %1014 = vmatprep.subr.mxu0 0.0
        %1015 = vmatpush1.msra.mxu0 0.0
        %1016 = vmatprep.subr.mxu0 0.0
        %1017 = vmatpush1.msra.mxu0 0.0
        %1018 = vmatprep.subr.mxu0 0.0
        %1019 = vmatpush1.msra.mxu0 0.0
        %1020 = vmatprep.subr.mxu0 0.0
        %1021 = vmatpush1.msra.mxu0 0.0
        %1022 = vmatprep.subr.mxu0 0.0
        %1023 = vmatpush1.msra.mxu0 0.0
        %1024 = vmatprep.subr.mxu0 0.0
        %1025 = vmatpush1.msra.mxu0 0.0
        %1026 = vmatprep.subr.mxu0 0.0
        %1027 = vmatpush1.msra.mxu0 0.0
        %1028 = vmatprep.subr.mxu0 0.0
        %1029 = vmatpush1.msra.mxu0 0.0
        %1030 = vmatprep.subr.mxu0 0.0
        %1031 = vmatpush1.msra.mxu0 0.0
        %1032 = vmatprep.subr.mxu0 0.0
        %1033 = vmatpush1.msra.mxu0 0.0
        %1034 = vmatprep.subr.mxu0 0.0
        %1035 = vmatpush1.msra.mxu0 0.0
        %1036 = vmatprep.subr.mxu0 0.0
        %1037 = vmatpush1.msra.mxu0 0.0
        %1038 = vmatprep.subr.mxu0 0.0
        %1039 = vmatpush1.msra.mxu0 0.0
        %1040 = vmatprep.subr.mxu0 0.0
        %1041 = vmatpush1.msra.mxu0 0.0
        %1042 = vmatprep.subr.mxu0 0.0
        %1043 = vmatpush1.msra.mxu0 0.0
        %1044 = vmatprep.mubr.f32.mxu0 0.0
        %1045 = vmatmul.mubr.f32.gmra.mrb[0].mxu0 %v969
        %v1046 = vpop.f32.mrb[0].mxu0
        %v1047 = vadd.f32 %v951, %v1046
        %v1048 = vpop.f32.mrb[0].mxu0
        %1049 = vmatprep.mubr.f32.mxu0 0.0
        %1050 = vmatmul.mubr.f32.gmra.mrb[0].mxu0 %v972
        %v1051 = vpop.f32.mrb[0].mxu0
        %v1052 = vadd.f32 %v956, %v1051
        %v1053 = vpop.f32.mrb[0].mxu0
        %1054 = vmatprep.mubr.f32.mxu0 0.0
        %1055 = vmatmul.mubr.f32.gmra.mrb[0].mxu0 %v975
        %v1056 = vpop.f32.mrb[0].mxu0
        %v1057 = vadd.f32 %v961, %v1056
        %v1058 = vpop.f32.mrb[0].mxu0
        %1059 = vmatprep.mubr.f32.mxu0 0.0
        %1060 = vmatmul.mubr.f32.gmra.mrb[0].mxu0 %v978
        %v1061 = vpop.f32.mrb[0].mxu0
        %v1062 = vadd.f32 %v966, %v1061
        %v1063 = vpop.f32.mrb[0].mxu0
        %1064 = vdwg.mxu0
        %v1065 = vld [vmem:[%s339] sm:$0xff]
        %v1066 = vld [vmem:[%s339 + $0x8] sm:$0xff]
        %v1067 = vld [vmem:[%s339 + $0x10] sm:$0xff]
        %v1068 = vld [vmem:[%s339 + $0x18] sm:$0xff]
        %v1069 = vadd.f32 %v1047, %v1065
        %v1070 = vadd.f32 %v1052, %v1066
        %v1071 = vadd.f32 %v1057, %v1067
        %v1072 = vadd.f32 %v1062, %v1068
        %v1073 = vld [vmem:[%s332] sm:$0xff]
        %v1074 = vld [vmem:[%s332 + $0x8] sm:$0xff]
        %v1075 = vld [vmem:[%s332 + $0x10] sm:$0xff]
        %v1076 = vld [vmem:[%s332 + $0x18] sm:$0xff]
        %v1077 = vld [vmem:[%s4] sm:$0xff]
        %v1078 = vld [vmem:[%s4 + $0x8] sm:$0xff]
        %v1079 = vld [vmem:[%s4 + $0x10] sm:$0xff]
        %v1080 = vld [vmem:[%s4 + $0x18] sm:$0xff]
        %v1081 = vld [vmem:[%s4 + $0x20] sm:$0xff]
        %v1082 = vld [vmem:[%s4 + $0x28] sm:$0xff]
        %v1083 = vld [vmem:[%s4 + $0x30] sm:$0xff]
        %v1084 = vld [vmem:[%s4 + $0x38] sm:$0xff]
        %v1085 = vld [vmem:[%s5 + $0x40] sm:$0xff]
        %v1086 = vld [vmem:[%s5 + $0x48] sm:$0xff]
        %v1087 = vld [vmem:[%s5 + $0x50] sm:$0xff]
        %v1088 = vld [vmem:[%s5 + $0x58] sm:$0xff]
        %v1089 = vld [vmem:[%s5 + $0x60] sm:$0xff]
        %v1090 = vld [vmem:[%s5 + $0x68] sm:$0xff]
        %v1091 = vld [vmem:[%s5 + $0x70] sm:$0xff]
        %v1092 = vld [vmem:[%s5 + $0x78] sm:$0xff]
        %1094 = vset.pattern.permute.xlu0 0
        %1095 = vperm.xlu0 %1094, %v1085
        %v1096 = vpop.permute.xlu0 %1095
        %1099 = vset.pattern.permute.xlu0 0
        %1100 = vperm.xlu0 %1099, %v1086
        %v1101 = vpop.permute.xlu0 %1100
        %1104 = vset.pattern.permute.xlu0 0
        %1105 = vperm.xlu0 %1104, %v1087
        %v1106 = vpop.permute.xlu0 %1105
        %1109 = vset.pattern.permute.xlu0 0
        %1110 = vperm.xlu0 %1109, %v1088
        %v1111 = vpop.permute.xlu0 %1110
        %1114 = vset.pattern.permute.xlu0 0
        %1115 = vperm.xlu0 %1114, %v1089
        %v1116 = vpop.permute.xlu0 %1115
        %1119 = vset.pattern.permute.xlu0 0
        %1120 = vperm.xlu0 %1119, %v1090
        %v1121 = vpop.permute.xlu0 %1120
        %1124 = vset.pattern.permute.xlu0 0
        %1125 = vperm.xlu0 %1124, %v1091
        %v1126 = vpop.permute.xlu0 %1125
        %1129 = vset.pattern.permute.xlu0 0
        %1130 = vperm.xlu0 %1129, %v1092
        %v1131 = vpop.permute.xlu0 %1130
        %vm1133 = vcmask 523264
        %v1135 = vsel %vm1133, %v1077, 0
        %v1138 = vsel %vm1133, %v1078, 0
        %v1141 = vsel %vm1133, %v1079, 0
        %v1144 = vsel %vm1133, %v1080, 0
        %v1147 = vsel %vm1133, %v1081, 0
        %v1150 = vsel %vm1133, %v1082, 0
        %v1153 = vsel %vm1133, %v1083, 0
        %v1156 = vsel %vm1133, %v1084, 0
        %1158 = vmatprep.subr.mxu0 0.0
        %1159 = vmatpush1.msra.mxu0 %v1073
        %1160 = vmatprep.subr.mxu0 0.0
        %1161 = vmatpush1.msra.mxu0 %v1074
        %1162 = vmatprep.subr.mxu0 0.0
        %1163 = vmatpush1.msra.mxu0 %v1075
        %1164 = vmatprep.subr.mxu0 0.0
        %1165 = vmatpush1.msra.mxu0 %v1076
        %1166 = vmatprep.subr.mxu0 0.0
        %1167 = vmatpush1.msra.mxu0 %v1069
        %1168 = vmatprep.subr.mxu0 0.0
        %1169 = vmatpush1.msra.mxu0 %v1070
        %1170 = vmatprep.subr.mxu0 0.0
        %1171 = vmatpush1.msra.mxu0 %v1071
        %1172 = vmatprep.subr.mxu0 0.0
        %1173 = vmatpush1.msra.mxu0 %v1072
        %1174 = vmatprep.subr.mxu0 0.0
        %1175 = vmatpush1.msra.mxu0 0.0
        %1176 = vmatprep.subr.mxu0 0.0
        %1177 = vmatpush1.msra.mxu0 0.0
        %1178 = vmatprep.subr.mxu0 0.0
        %1179 = vmatpush1.msra.mxu0 0.0
        %1180 = vmatprep.subr.mxu0 0.0
        %1181 = vmatpush1.msra.mxu0 0.0
        %1182 = vmatprep.subr.mxu0 0.0
        %1183 = vmatpush1.msra.mxu0 0.0
        %1184 = vmatprep.subr.mxu0 0.0
        %1185 = vmatpush1.msra.mxu0 0.0
        %1186 = vmatprep.subr.mxu0 0.0
        %1187 = vmatpush1.msra.mxu0 0.0
        %1188 = vmatprep.subr.mxu0 0.0
        %1189 = vmatpush1.msra.mxu0 0.0
        %1190 = vmatprep.subr.mxu0 0.0
        %1191 = vmatpush1.msra.mxu0 0.0
        %1192 = vmatprep.subr.mxu0 0.0
        %1193 = vmatpush1.msra.mxu0 0.0
        %1194 = vmatprep.subr.mxu0 0.0
        %1195 = vmatpush1.msra.mxu0 0.0
        %1196 = vmatprep.subr.mxu0 0.0
        %1197 = vmatpush1.msra.mxu0 0.0
        %1198 = vmatprep.subr.mxu0 0.0
        %1199 = vmatpush1.msra.mxu0 0.0
        %1200 = vmatprep.subr.mxu0 0.0
        %1201 = vmatpush1.msra.mxu0 0.0
        %1202 = vmatprep.subr.mxu0 0.0
        %1203 = vmatpush1.msra.mxu0 0.0
        %1204 = vmatprep.subr.mxu0 0.0
        %1205 = vmatpush1.msra.mxu0 0.0
        %1206 = vmatprep.subr.mxu0 0.0
        %1207 = vmatpush1.msra.mxu0 0.0
        %1208 = vmatprep.subr.mxu0 0.0
        %1209 = vmatpush1.msra.mxu0 0.0
        %1210 = vmatprep.subr.mxu0 0.0
        %1211 = vmatpush1.msra.mxu0 0.0
        %1212 = vmatprep.subr.mxu0 0.0
        %1213 = vmatpush1.msra.mxu0 0.0
        %1214 = vmatprep.subr.mxu0 0.0
        %1215 = vmatpush1.msra.mxu0 0.0
        %1216 = vmatprep.subr.mxu0 0.0
        %1217 = vmatpush1.msra.mxu0 0.0
        %1218 = vmatprep.subr.mxu0 0.0
        %1219 = vmatpush1.msra.mxu0 0.0
        %1220 = vmatprep.subr.mxu0 0.0
        %1221 = vmatpush1.msra.mxu0 0.0
        %1222 = vmatprep.mubr.f32.mxu0 0.0
        %1223 = vmatmul.mubr.f32.gmra.mrb[0].mxu0 %v1135
        %v1224 = vpop.f32.mrb[0].mxu0
        %v1225 = vadd.f32 %v1096, %v1224
        %v1226 = vpop.f32.mrb[0].mxu0
        %1227 = vmatprep.mubr.f32.mxu0 0.0
        %1228 = vmatmul.mubr.f32.gmra.mrb[0].mxu0 %v1138
        %v1229 = vpop.f32.mrb[0].mxu0
        %v1230 = vadd.f32 %v1101, %v1229
        %v1231 = vpop.f32.mrb[0].mxu0
        %1232 = vmatprep.mubr.f32.mxu0 0.0
        %1233 = vmatmul.mubr.f32.gmra.mrb[0].mxu0 %v1141
        %v1234 = vpop.f32.mrb[0].mxu0
        %v1235 = vadd.f32 %v1106, %v1234
        %v1236 = vpop.f32.mrb[0].mxu0
        %1237 = vmatprep.mubr.f32.mxu0 0.0
        %1238 = vmatmul.mubr.f32.gmra.mrb[0].mxu0 %v1144
        %v1239 = vpop.f32.mrb[0].mxu0
        %v1240 = vadd.f32 %v1111, %v1239
        %v1241 = vpop.f32.mrb[0].mxu0
        %1242 = vmatprep.mubr.f32.mxu0 0.0
        %1243 = vmatmul.mubr.f32.gmra.mrb[0].mxu0 %v1147
        %v1244 = vpop.f32.mrb[0].mxu0
        %v1245 = vadd.f32 %v1116, %v1244
        %v1246 = vpop.f32.mrb[0].mxu0
        %1247 = vmatprep.mubr.f32.mxu0 0.0
        %1248 = vmatmul.mubr.f32.gmra.mrb[0].mxu0 %v1150
        %v1249 = vpop.f32.mrb[0].mxu0
        %v1250 = vadd.f32 %v1121, %v1249
        %v1251 = vpop.f32.mrb[0].mxu0
        %1252 = vmatprep.mubr.f32.mxu0 0.0
        %1253 = vmatmul.mubr.f32.gmra.mrb[0].mxu0 %v1153
        %v1254 = vpop.f32.mrb[0].mxu0
        %v1255 = vadd.f32 %v1126, %v1254
        %v1256 = vpop.f32.mrb[0].mxu0
        %1257 = vmatprep.mubr.f32.mxu0 0.0
        %1258 = vmatmul.mubr.f32.gmra.mrb[0].mxu0 %v1156
        %v1259 = vpop.f32.mrb[0].mxu0
        %v1260 = vadd.f32 %v1131, %v1259
        %v1261 = vpop.f32.mrb[0].mxu0
        %1262 = vdwg.mxu0
        %v1263 = vmax.f32 %v1225, 0.0
        %v1264 = vmax.f32 %v1230, 0.0
        %v1265 = vmax.f32 %v1235, 0.0
        %v1266 = vmax.f32 %v1240, 0.0
        %v1267 = vmax.f32 %v1245, 0.0
        %v1268 = vmax.f32 %v1250, 0.0
        %v1269 = vmax.f32 %v1255, 0.0
        %v1270 = vmax.f32 %v1260, 0.0
        %v1271 = vld [vmem:[%s4 + $0x40] sm:$0xff]
        %v1272 = vld [vmem:[%s4 + $0x48] sm:$0xff]
        %v1273 = vld [vmem:[%s4 + $0x50] sm:$0xff]
        %v1274 = vld [vmem:[%s4 + $0x58] sm:$0xff]
        %v1275 = vld [vmem:[%s5 + $0x80] sm:$0xff]
        %v1276 = vld [vmem:[%s5 + $0x88] sm:$0xff]
        %v1277 = vld [vmem:[%s5 + $0x90] sm:$0xff]
        %v1278 = vld [vmem:[%s5 + $0x98] sm:$0xff]
        %1280 = vset.pattern.permute.xlu0 0
        %1281 = vperm.xlu0 %1280, %v1275
        %v1282 = vpop.permute.xlu0 %1281
        %1285 = vset.pattern.permute.xlu0 0
        %1286 = vperm.xlu0 %1285, %v1276
        %v1287 = vpop.permute.xlu0 %1286
        %1290 = vset.pattern.permute.xlu0 0
        %1291 = vperm.xlu0 %1290, %v1277
        %v1292 = vpop.permute.xlu0 %1291
        %1295 = vset.pattern.permute.xlu0 0
        %1296 = vperm.xlu0 %1295, %v1278
        %v1297 = vpop.permute.xlu0 %1296
        %v1300 = vsel %vm1133, %v1271, 0
        %v1303 = vsel %vm1133, %v1272, 0
        %v1306 = vsel %vm1133, %v1273, 0
        %v1309 = vsel %vm1133, %v1274, 0
        %1311 = vmatprep.subr.mxu0 0.0
        %1312 = vmatpush1.msra.mxu0 %v1263
        %1313 = vmatprep.subr.mxu0 0.0
        %1314 = vmatpush1.msra.mxu0 %v1264
        %1315 = vmatprep.subr.mxu0 0.0
        %1316 = vmatpush1.msra.mxu0 %v1265
        %1317 = vmatprep.subr.mxu0 0.0
        %1318 = vmatpush1.msra.mxu0 %v1266
        %1319 = vmatprep.subr.mxu0 0.0
        %1320 = vmatpush1.msra.mxu0 %v1267
        %1321 = vmatprep.subr.mxu0 0.0
        %1322 = vmatpush1.msra.mxu0 %v1268
        %1323 = vmatprep.subr.mxu0 0.0
        %1324 = vmatpush1.msra.mxu0 %v1269
        %1325 = vmatprep.subr.mxu0 0.0
        %1326 = vmatpush1.msra.mxu0 %v1270
        %1327 = vmatprep.subr.mxu0 0.0
        %1328 = vmatpush1.msra.mxu0 0.0
        %1329 = vmatprep.subr.mxu0 0.0
        %1330 = vmatpush1.msra.mxu0 0.0
        %1331 = vmatprep.subr.mxu0 0.0
        %1332 = vmatpush1.msra.mxu0 0.0
        %1333 = vmatprep.subr.mxu0 0.0
        %1334 = vmatpush1.msra.mxu0 0.0
        %1335 = vmatprep.subr.mxu0 0.0
        %1336 = vmatpush1.msra.mxu0 0.0
        %1337 = vmatprep.subr.mxu0 0.0
        %1338 = vmatpush1.msra.mxu0 0.0
        %1339 = vmatprep.subr.mxu0 0.0
        %1340 = vmatpush1.msra.mxu0 0.0
        %1341 = vmatprep.subr.mxu0 0.0
        %1342 = vmatpush1.msra.mxu0 0.0
        %1343 = vmatprep.subr.mxu0 0.0
        %1344 = vmatpush1.msra.mxu0 0.0
        %1345 = vmatprep.subr.mxu0 0.0
        %1346 = vmatpush1.msra.mxu0 0.0
        %1347 = vmatprep.subr.mxu0 0.0
        %1348 = vmatpush1.msra.mxu0 0.0
        %1349 = vmatprep.subr.mxu0 0.0
        %1350 = vmatpush1.msra.mxu0 0.0
        %1351 = vmatprep.subr.mxu0 0.0
        %1352 = vmatpush1.msra.mxu0 0.0
        %1353 = vmatprep.subr.mxu0 0.0
        %1354 = vmatpush1.msra.mxu0 0.0
        %1355 = vmatprep.subr.mxu0 0.0
        %1356 = vmatpush1.msra.mxu0 0.0
        %1357 = vmatprep.subr.mxu0 0.0
        %1358 = vmatpush1.msra.mxu0 0.0
        %1359 = vmatprep.subr.mxu0 0.0
        %1360 = vmatpush1.msra.mxu0 0.0
        %1361 = vmatprep.subr.mxu0 0.0
        %1362 = vmatpush1.msra.mxu0 0.0
        %1363 = vmatprep.subr.mxu0 0.0
        %1364 = vmatpush1.msra.mxu0 0.0
        %1365 = vmatprep.subr.mxu0 0.0
        %1366 = vmatpush1.msra.mxu0 0.0
        %1367 = vmatprep.subr.mxu0 0.0
        %1368 = vmatpush1.msra.mxu0 0.0
        %1369 = vmatprep.subr.mxu0 0.0
        %1370 = vmatpush1.msra.mxu0 0.0
        %1371 = vmatprep.subr.mxu0 0.0
        %1372 = vmatpush1.msra.mxu0 0.0
        %1373 = vmatprep.subr.mxu0 0.0
        %1374 = vmatpush1.msra.mxu0 0.0
        %1375 = vmatprep.mubr.f32.mxu0 0.0
        %1376 = vmatmul.mubr.f32.gmra.mrb[0].mxu0 %v1300
        %v1377 = vpop.f32.mrb[0].mxu0
        %v1378 = vadd.f32 %v1282, %v1377
        %v1379 = vpop.f32.mrb[0].mxu0
        %1380 = vmatprep.mubr.f32.mxu0 0.0
        %1381 = vmatmul.mubr.f32.gmra.mrb[0].mxu0 %v1303
        %v1382 = vpop.f32.mrb[0].mxu0
        %v1383 = vadd.f32 %v1287, %v1382
        %v1384 = vpop.f32.mrb[0].mxu0
        %1385 = vmatprep.mubr.f32.mxu0 0.0
        %1386 = vmatmul.mubr.f32.gmra.mrb[0].mxu0 %v1306
        %v1387 = vpop.f32.mrb[0].mxu0
        %v1388 = vadd.f32 %v1292, %v1387
        %v1389 = vpop.f32.mrb[0].mxu0
        %1390 = vmatprep.mubr.f32.mxu0 0.0
        %1391 = vmatmul.mubr.f32.gmra.mrb[0].mxu0 %v1309
        %v1392 = vpop.f32.mrb[0].mxu0
        %v1393 = vadd.f32 %v1297, %v1392
        %v1394 = vpop.f32.mrb[0].mxu0
        %1395 = vdwg.mxu0
        %1396 = vst [vmem:[%s372] sm:$0xff] %v1378
        %1397 = vst [vmem:[%s372 + $0x8] sm:$0xff] %v1383
        %1398 = vst [vmem:[%s372 + $0x10] sm:$0xff] %v1388
        %1399 = vst [vmem:[%s372 + $0x18] sm:$0xff] %v1393
        %s1400 = sand.u32 %s169, 1
        %s1401 = scalar_lea.sflag [#allocation5], %s1400
        %s1402 = sand.u32 %s169, 1
        %s1403 = smul.addr %s1402, 32
        %s1404 = scalar_lea.vmem [#allocation4], %s1403
        // Predicated region
        $region121: #{tpu_custom_call.1} parent=111 // pred_check
          %p1405 = pneg %p179
        $region122: #{tpu_custom_call.1} parent=111 // pred_check_branch
          %1407 = sbr.rel (%p1405) target = $region124
        $region123: #{tpu_custom_call.1} parent=111 // pred_region
          %s1409 = ssub.s32 512, 512
          %1410 = vsyncadd %s1401, %s1409
          %s1411 = smul.addr %s20, 128
          %s1412 = scalar_lea.hbm %s6, %s1411
          %s1413 = sshll.u32 %s1404, 4
          %s1414 = int_to_ptr.vmem [resolvable:$true] %s1413
          %1419 = dma.vmem_to_hbm [thread:$0]  %s1414, 512, %s1412, %s1401, 128, 256, 8
        $region124: #{tpu_custom_call.1} parent=111 // pred_fallthru
          _
      $region112: #{tpu_custom_call.1} parent=5 // pred_fallthru
        _
      %p1420 = scmp.le.s32.totalorder 2, %s15
      // Predicated region
      $region125: #{tpu_custom_call.1} parent=5 // pred_check
        %p1421 = pneg %p1420
      $region126: #{tpu_custom_call.1} parent=5 // pred_check_branch
        %1423 = sbr.rel (%p1421) target = $region128
      $region127: #{tpu_custom_call.1} parent=5 // pred_region
        %s1424 = ssub.s32 %s15, 2
        // Predicated region
        $region129: #{tpu_custom_call.1} parent=127 // pred_check
          %p1425 = pneg %p185
        $region130: #{tpu_custom_call.1} parent=127 // pred_check_branch
          %1427 = sbr.rel (%p1425) target = $region132
        $region131: #{tpu_custom_call.1} parent=127 // pred_region
          %s1428 = sand.u32 %s170, 1
          %s1429 = scalar_lea.sflag [#allocation5], %s1428
          %s1430 = sand.u32 %s170, 1
          %s1431 = smul.addr %s1430, 32
          %s1432 = scalar_lea.vmem [#allocation4], %s1431
          %1433 = dma.done %s1429, 512
        $region132: #{tpu_custom_call.1} parent=127 // pred_fallthru
          _
      $region128: #{tpu_custom_call.1} parent=5 // pred_fallthru
        _
    $region6: #{tpu_custom_call.1} parent=1 // loop_footer
      %s19 = sadd.s32 1, %s15
    $region7: #{tpu_custom_call.1} parent=1 // loop_footer_branch
      %14 = sbr.rel target = $region3
    $region8: #{tpu_custom_call.1} parent=1 // loop_exit
      _
    %1434 = vsyncpa [#allocation5], 1
    %s1435 = scalar_lea.sflag [#allocation5], 1
    %1436 = vsyncpa %s1435, 1

</llo_original>
